<compile_context>
chip_gen: v7x
topology: tpu7x:2x2x1
jax: 0.10.0
libtpu: 0.0.40
codegen_flags: <defaults>
</compile_context>

<pallas_src>
import math

import jax
import jax.numpy as jnp
from jax.experimental import pallas as pl
from jax.experimental.pallas import tpu as pltpu


# ----------------------------------------------------------------------------
# Host-side parameter preparation (done ONCE, not on every forward call)
# ----------------------------------------------------------------------------
def prepare_mha_params(params, *, n_heads, mxu_dtype=jnp.bfloat16):
    """Fuse, pre-scale and pre-cast the MultiHeadAttention weights once.

    * 1/sqrt(d_head) is folded into W_q / b_q (constant fold on the weights).
    * Q|K|V and K|V weights / biases are concatenated once here.
    * Weights are pre-cast to `mxu_dtype` (bf16 default -> half the weight DMA
      and no in-kernel weight casts).  Biases stay f32 (added after f32 MXU
      accumulation).  Pass mxu_dtype=jnp.float32 for bit-closer matmuls.
    """
    d_token = params['wq'].shape[0]
    assert d_token % n_heads == 0, 'd_token must be multiple of n_heads'
    scale = 1.0 / math.sqrt(d_token // n_heads)
    wq = params['wq'] * scale
    bq = params['bq'] * scale
    f32 = jnp.float32
    return {
        'n_heads': n_heads,
        'd_token': d_token,
        # self-attention: fused QKV projection
        'wqkv': jnp.concatenate([wq, params['wk'], params['wv']], axis=1).astype(mxu_dtype),
        'bqkv': jnp.concatenate([bq, params['bk'], params['bv']], axis=1).astype(f32),
        # cross-attention: Q projection + fused K|V projection
        'wq': wq.astype(mxu_dtype),
        'bq': bq.astype(f32),
        'wkv': jnp.concatenate([params['wk'], params['wv']], axis=1).astype(mxu_dtype),
        'bkv': jnp.concatenate([params['bk'], params['bv']], axis=1).astype(f32),
        # output projection
        'wo': params['wo'].astype(mxu_dtype),
        'bo': params['bo'].astype(f32),
    }


# ----------------------------------------------------------------------------
# In-kernel helpers
# ----------------------------------------------------------------------------
def _split_heads(t3, batch, n_tok, n_heads, d_head):
    """(batch, n_tok, n_heads*d_head) -> (batch*n_heads, n_tok, d_head).

    Built from static lane slices, one major-axis stack and a major-dim
    reshape (all of which lower cleanly in Mosaic).
    """
    parts = [t3[:, :, h * d_head:(h + 1) * d_head] for h in range(n_heads)]
    return jnp.stack(parts, axis=1).reshape(batch * n_heads, n_tok, d_head)


def _attention_core(q2, k2, v2, wo, bo, *, batch, n_q, n_kv, n_heads, d_head):
    """q2: (batch*n_q, D) (scale already folded into W_q); k2/v2: (batch*n_kv, D)."""
    d = n_heads * d_head
    mxu_dt = wo.dtype                                       # weights pre-cast on host

    q3 = q2.reshape(batch, n_q, d).astype(mxu_dt)
    k3 = k2.reshape(batch, n_kv, d).astype(mxu_dt)
    v3 = v2.reshape(batch, n_kv, d).astype(mxu_dt)
    qh = _split_heads(q3, batch, n_q, n_heads, d_head)      # (B*H, n_q, dh)
    kh = _split_heads(k3, batch, n_kv, n_heads, d_head)     # (B*H, n_kv, dh)
    vh = _split_heads(v3, batch, n_kv, n_heads, d_head)

    # Head-batched logits: single 3-D einsum (batch dim = batch*n_heads).
    logits = jnp.einsum('bqd,bkd->bqk', qh, kh,
                        preferred_element_type=jnp.float32)  # (B*H, n_q, n_kv)

    # Numerically-stable softmax in f32; divide -> EUP reciprocal.
    m = jnp.max(logits, axis=-1, keepdims=True)
    e = jnp.exp(logits - m)
    probs = e * pl.reciprocal(jnp.sum(e, axis=-1, keepdims=True), approx=True)

    ctx = jnp.einsum('bqk,bkd->bqd', probs.astype(mxu_dt), vh,
                     preferred_element_type=jnp.float32)     # (B*H, n_q, dh)

    # Re-pack heads along lanes and do ONE output-projection matmul.
    ctx4 = ctx.reshape(batch, n_heads, n_q, d_head)
    ctx_cat = jnp.concatenate([ctx4[:, h] for h in range(n_heads)], axis=-1)
    ctx2 = ctx_cat.reshape(batch * n_q, d)
    out2 = jnp.dot(ctx2.astype(mxu_dt), wo,
                   preferred_element_type=jnp.float32) + bo  # bias added once
    return out2, logits, probs


def _make_kernel(n_heads, d_head, self_attention, return_attention):
    def epilogue(out2, logits, probs, out_ref, attn_refs, bt, n_q, n_kv, d):
        out_ref[...] = out2.reshape(bt, n_q, d)
        if attn_refs:
            logits_ref, probs_ref = attn_refs
            logits_ref[...] = logits.reshape(bt, n_heads, n_q, n_kv).astype(logits_ref.dtype)
            probs_ref[...] = probs.reshape(bt, n_heads, n_q, n_kv).astype(probs_ref.dtype)

    if self_attention:
        def kernel(x_ref, wqkv_ref, bqkv_ref, wo_ref, bo_ref, out_ref, *attn_refs):
            bt, n_tok, d = x_ref.shape
            x2 = x_ref[...].reshape(bt * n_tok, d)           # fold batch into M
            qkv = jnp.dot(x2.astype(wqkv_ref.dtype), wqkv_ref[...],
                          preferred_element_type=jnp.float32) + bqkv_ref[...]
            out2, logits, probs = _attention_core(
                qkv[:, :d], qkv[:, d:2 * d], qkv[:, 2 * d:], wo_ref[...], bo_ref[...],
                batch=bt, n_q=n_tok, n_kv=n_tok, n_heads=n_heads, d_head=d_head)
            epilogue(out2, logits, probs, out_ref,
                     attn_refs if return_attention else (), bt, n_tok, n_tok, d)
    else:
        def kernel(xq_ref, xkv_ref, wq_ref, bq_ref, wkv_ref, bkv_ref,
                   wo_ref, bo_ref, out_ref, *attn_refs):
            bt, n_q, d = xq_ref.shape
            _, n_kv, _ = xkv_ref.shape
            xq2 = xq_ref[...].reshape(bt * n_q, d)
            xkv2 = xkv_ref[...].reshape(bt * n_kv, d)
            q2 = jnp.dot(xq2.astype(wq_ref.dtype), wq_ref[...],
                         preferred_element_type=jnp.float32) + bq_ref[...]
            kv = jnp.dot(xkv2.astype(wkv_ref.dtype), wkv_ref[...],
                         preferred_element_type=jnp.float32) + bkv_ref[...]
            out2, logits, probs = _attention_core(
                q2, kv[:, :d], kv[:, d:], wo_ref[...], bo_ref[...],
                batch=bt, n_q=n_q, n_kv=n_kv, n_heads=n_heads, d_head=d_head)
            epilogue(out2, logits, probs, out_ref,
                     attn_refs if return_attention else (), bt, n_q, n_kv, d)
    return kernel


# ----------------------------------------------------------------------------
# Wrapper (matches MultiHeadAttention.forward semantics)
# ----------------------------------------------------------------------------
def _choose_batch_tile(batch, n_q_tokens, target_rows=256):
    """Fold enough batch rows into M (~256 rows), but keep >= 2 grid steps."""
    bt = max(1, target_rows // max(1, n_q_tokens))
    bt = min(bt, batch)
    if batch > 1:
        bt = min(bt, (batch + 1) // 2)   # grid >= 2 so both v7x TensorCores get work
    return bt


def multi_head_attention(x_q, x_kv, prepared, *, key_compression=None,
                         value_compression=None, return_attention=True,
                         attn_dtype=jnp.float32, batch_tile=None):
    """Returns (tokens, {'attention_logits', 'attention_probs'}) like the PyTorch
    module when return_attention=True, otherwise (tokens, {})."""
    if (key_compression is None) != (value_compression is None):
        raise ValueError('If key_compression is (not) None, then value_compression '
                         'must (not) be None')
    if key_compression is not None:
        # TODO(synk): Linformer key/value compression (Linear over the token dim)
        # is not implemented in the Pallas path.
        raise NotImplementedError('Linformer compression path not implemented')

    n_heads = prepared['n_heads']
    B, Tq, D = x_q.shape
    Bk, Tkv, Dk = x_kv.shape
    assert B == Bk and D == Dk == prepared['d_token']
    # TODO(synk): n_heads == 1 variant (W_out is None in the module) not implemented.
    assert n_heads > 1, 'n_heads == 1 (no W_out) variant not implemented'
    assert D % n_heads == 0, 'd_token must be multiple of n_heads'
    d_head = D // n_heads

    self_attention = x_q is x_kv

    Bt = _choose_batch_tile(B, Tq) if batch_tile is None else max(1, min(batch_tile, B))
    n_blocks = -(-B // Bt)
    B_pad = n_blocks * Bt
    if B_pad != B:                      # pad batch instead of degrading Bt
        pad = ((0, B_pad - B), (0, 0), (0, 0))
        x_q = jnp.pad(x_q, pad)
        x_kv = x_q if self_attention else jnp.pad(x_kv, pad)

    kernel = _make_kernel(n_heads, d_head, self_attention, return_attention)

    def full(a):   # whole-array (weight/bias) block, resident across the grid
        return pl.BlockSpec(a.shape, lambda i: (0, 0))

    def tok_spec(T):
        return pl.BlockSpec((Bt, T, D), lambda i: (i, 0, 0))

    if self_attention:
        args = (x_q, prepared['wqkv'], prepared['bqkv'], prepared['wo'], prepared['bo'])
        weight_args = args[1:]
        in_specs = [tok_spec(Tq)] + [full(a) for a in weight_args]
    else:
        args = (x_q, x_kv, prepared['wq'], prepared['bq'], prepared['wkv'],
                prepared['bkv'], prepared['wo'], prepared['bo'])
        weight_args = args[2:]
        in_specs = [tok_spec(Tq), tok_spec(Tkv)] + [full(a) for a in weight_args]

    token_shape = jax.ShapeDtypeStruct((B_pad, Tq, D), jnp.float32)
    if return_attention:
        attn_shape = jax.ShapeDtypeStruct((B_pad, n_heads, Tq, Tkv), attn_dtype)
        attn_spec = pl.BlockSpec((Bt, n_heads, Tq, Tkv), lambda i: (i, 0, 0, 0))
        out_shape = (token_shape, attn_shape, attn_shape)
        out_specs = (tok_spec(Tq), attn_spec, attn_spec)
    else:
        out_shape = token_shape
        out_specs = tok_spec(Tq)

    # VMEM budget: derived for v7x's 64 MiB physical; above v5e's 16 MiB default.
    f32b = 4
    attn_bytes = Bt * n_heads * Tq * Tkv * f32b
    est = (2 * Bt * (Tq + Tkv) * D * f32b                    # double-buffered inputs
           + 2 * Bt * Tq * D * f32b                          # double-buffered token out
           + (4 * attn_bytes if return_attention else 0)     # double-buffered attn outs
           + 2 * sum(int(a.size) * a.dtype.itemsize for a in weight_args)
           + 8 * Bt * Tq * D * f32b                          # live qkv / ctx
           + 4 * attn_bytes)                                 # live logits / probs
    vmem_limit = int(min(48 << 20, max(32 << 20, 2 * est)))

    # TODO(synk): pipeline_mode=pl.Buffered(1) on the constant weight blocks would
    # halve their resident VMEM; omitted pending verification of that lowering.
    results = pl.pallas_call(
        kernel,
        out_shape=out_shape,
        grid=(n_blocks,),
        in_specs=in_specs,
        out_specs=out_specs,
        compiler_params=pltpu.CompilerParams(
            dimension_semantics=("parallel",),
            vmem_limit_bytes=vmem_limit),
    )(*args)

    if return_attention:
        out, logits, probs = results
        state = {'attention_logits': logits[:B].reshape(B * n_heads, Tq, Tkv),
                 'attention_probs': probs[:B].reshape(B * n_heads, Tq, Tkv)}
    else:
        out, state = results, {}
    return out[:B], state


# ----------------------------------------------------------------------------
# Pure-JAX reference (mirrors the PyTorch forward) for correctness checking
# ----------------------------------------------------------------------------
def _mha_reference(x_q, x_kv, params, n_heads):
    B, Tq, D = x_q.shape
    d_head = D // n_heads
    q = x_q @ params['wq'] + params['bq']
    k = x_kv @ params['wk'] + params['bk']
    v = x_kv @ params['wv'] + params['bv']

    def split(t):
        b, n, _ = t.shape
        return (t.reshape(b, n, n_heads, d_head).transpose(0, 2, 1, 3)
                 .reshape(b * n_heads, n, d_head))

    q, k, v = split(q), split(k), split(v)
    logits = q @ jnp.swapaxes(k, 1, 2) / math.sqrt(d_head)
    probs = jax.nn.softmax(logits, axis=-1)
    ctx = probs @ v
    ctx = (ctx.reshape(B, n_heads, Tq, d_head).transpose(0, 2, 1, 3)
              .reshape(B, Tq, D))
    out = ctx @ params['wo'] + params['bo']
    return out, logits, probs


# ----------------------------------------------------------------------------
if __name__ == "__main__":
    key = jax.random.PRNGKey(0)
    kx, kkv, kq, kk, kv_, ko, kbq, kbk, kbv, kbo = jax.random.split(key, 10)

    B, T, D, H = 8, 8, 32, 4     # batch, n_tokens, d_token, n_heads
    s = 1.0 / math.sqrt(D)
    params = {
        'wq': (s * jax.random.normal(kq, (D, D))).astype(jnp.float32),
        'bq': (0.05 * jax.random.normal(kbq, (1, D))).astype(jnp.float32),
        'wk': (s * jax.random.normal(kk, (D, D))).astype(jnp.float32),
        'bk': (0.05 * jax.random.normal(kbk, (1, D))).astype(jnp.float32),
        'wv': (s * jax.random.normal(kv_, (D, D))).astype(jnp.float32),
        'bv': (0.05 * jax.random.normal(kbv, (1, D))).astype(jnp.float32),
        'wo': (s * jax.random.normal(ko, (D, D))).astype(jnp.float32),
        'bo': (0.05 * jax.random.normal(kbo, (1, D))).astype(jnp.float32),
    }
    prepared = prepare_mha_params(params, n_heads=H)     # one-time weight prep

    # ---- self-attention (x_q is x_kv): the FT-Transformer usage --------------
    x = jax.random.normal(kx, (B, T, D), dtype=jnp.float32)
    out, state = multi_head_attention(x, x, prepared)
    out = jax.block_until_ready(out)
    ref_out, ref_logits, ref_probs = _mha_reference(x, x, params, H)

    assert out.shape == (B, T, D), out.shape
    assert state['attention_logits'].shape == (B * H, T, T)
    assert jnp.all(jnp.isfinite(out))
    # loose tolerances: kernel matmuls run with bf16 operands (f32 accumulation)
    assert jnp.allclose(out, ref_out, atol=1.5e-1, rtol=1e-1), \
        float(jnp.max(jnp.abs(out - ref_out)))
    assert jnp.allclose(state['attention_logits'], ref_logits, atol=1.5e-1)
    assert jnp.allclose(state['attention_probs'], ref_probs, atol=8e-2)

    # ---- perf path: attention diagnostics dropped -----------------------------
    out_fast, state_fast = multi_head_attention(x, x, prepared, return_attention=False)
    out_fast = jax.block_until_ready(out_fast)
    assert not state_fast
    assert jnp.allclose(out_fast, ref_out, atol=1.5e-1, rtol=1e-1)

    # ---- cross-attention (x_q is not x_kv) -----------------------------------
    Tkv = 16
    x_kv = jax.random.normal(kkv, (B, Tkv, D), dtype=jnp.float32)
    out2, state2 = multi_head_attention(x, x_kv, prepared)
    out2 = jax.block_until_ready(out2)
    ref_out2, _, ref_probs2 = _mha_reference(x, x_kv, params, H)
    assert out2.shape == (B, T, D)
    assert jnp.all(jnp.isfinite(out2))
    assert jnp.allclose(out2, ref_out2, atol=1.5e-1, rtol=1e-1)
    assert jnp.allclose(state2['attention_probs'], ref_probs2, atol=8e-2)

    # ---- non-divisible batch (exercises batch padding, Bt stays large) -------
    x6 = x[:6]
    out6, state6 = multi_head_attention(x6, x6, prepared, batch_tile=4)
    out6 = jax.block_until_ready(out6)
    ref_out6, _, ref_probs6 = _mha_reference(x6, x6, params, H)
    assert out6.shape == (6, T, D)
    assert state6['attention_probs'].shape == (6 * H, T, T)
    assert jnp.allclose(out6, ref_out6, atol=1.5e-1, rtol=1e-1)
    assert jnp.allclose(state6['attention_probs'], ref_probs6, atol=8e-2)

    print("KERNEL_OK")
</pallas_src>

<mosaic_0001>
module attributes {stable_mosaic.version = 11 : i64} {
  func.func @kernel(%arg0: i32, %arg1: memref<4x8x32xf32, #tpu.memory_space<vmem>>, %arg2: memref<32x96xbf16, #tpu.memory_space<vmem>>, %arg3: memref<1x96xf32, #tpu.memory_space<vmem>>, %arg4: memref<32x32xbf16, #tpu.memory_space<vmem>>, %arg5: memref<1x32xf32, #tpu.memory_space<vmem>>, %arg6: memref<4x8x32xf32, #tpu.memory_space<vmem>>, %arg7: memref<4x4x8x8xf32, #tpu.memory_space<vmem>>, %arg8: memref<4x4x8x8xf32, #tpu.memory_space<vmem>>) attributes {dimension_semantics = [#tpu.dimension_semantics<parallel>], iteration_bounds = array<i64: 2>, scalar_prefetch = 0 : i64, scratch_operands = 0 : i64, tpu.core_type = #tpu.core_type<tc>, window_params = [{transform_indices = @transform_0, window_bounds = array<i64: 4, 8, 32>}, {pipeline_mode = #tpu.pipeline_mode<synchronous>, transform_indices = @transform_1, window_bounds = array<i64: 32, 96>}, {pipeline_mode = #tpu.pipeline_mode<synchronous>, transform_indices = @transform_2, window_bounds = array<i64: 1, 96>}, {pipeline_mode = #tpu.pipeline_mode<synchronous>, transform_indices = @transform_3, window_bounds = array<i64: 32, 32>}, {pipeline_mode = #tpu.pipeline_mode<synchronous>, transform_indices = @transform_4, window_bounds = array<i64: 1, 32>}, {transform_indices = @transform_5, window_bounds = array<i64: 4, 8, 32>}, {transform_indices = @transform_6, window_bounds = array<i64: 4, 4, 8, 8>}, {transform_indices = @transform_7, window_bounds = array<i64: 4, 4, 8, 8>}]} {
    %c0 = arith.constant 0 : index
    %c0_0 = arith.constant 0 : index
    %c0_1 = arith.constant 0 : index
    %0 = vector.load %arg1[%c0, %c0_0, %c0_1] : memref<4x8x32xf32, #tpu.memory_space<vmem>>, vector<4x8x32xf32>
    %1 = vector.shape_cast %0 : vector<4x8x32xf32> to vector<32x32xf32>
    %2 = arith.truncf %1 : vector<32x32xf32> to vector<32x32xbf16>
    %c0_2 = arith.constant 0 : index
    %c0_3 = arith.constant 0 : index
    %3 = vector.load %arg2[%c0_2, %c0_3] : memref<32x96xbf16, #tpu.memory_space<vmem>>, vector<32x96xbf16>
    %cst = arith.constant dense<0.000000e+00> : vector<32x96xf32>
    %4 = tpu.matmul %2, %3, %cst {dimension_numbers = #tpu.dot_dimension_numbers<[1], [0], [0], [1], [0, 0, 1, 1], [], []>} : vector<32x32xbf16>, vector<32x96xbf16>, vector<32x96xf32> -> vector<32x96xf32>
    %c0_4 = arith.constant 0 : index
    %c0_5 = arith.constant 0 : index
    %5 = vector.load %arg3[%c0_4, %c0_5] : memref<1x96xf32, #tpu.memory_space<vmem>>, vector<1x96xf32>
    %6 = vector.broadcast %5 : vector<1x96xf32> to vector<32x96xf32>
    %7 = arith.addf %4, %6 : vector<32x96xf32>
    %8 = vector.extract_strided_slice %7 {offsets = [0, 0], sizes = [32, 32], strides = [1, 1]} : vector<32x96xf32> to vector<32x32xf32>
    %9 = vector.extract_strided_slice %7 {offsets = [0, 32], sizes = [32, 32], strides = [1, 1]} : vector<32x96xf32> to vector<32x32xf32>
    %10 = vector.extract_strided_slice %7 {offsets = [0, 64], sizes = [32, 32], strides = [1, 1]} : vector<32x96xf32> to vector<32x32xf32>
    %c0_6 = arith.constant 0 : index
    %c0_7 = arith.constant 0 : index
    %11 = vector.load %arg4[%c0_6, %c0_7] : memref<32x32xbf16, #tpu.memory_space<vmem>>, vector<32x32xbf16>
    %c0_8 = arith.constant 0 : index
    %c0_9 = arith.constant 0 : index
    %12 = vector.load %arg5[%c0_8, %c0_9] : memref<1x32xf32, #tpu.memory_space<vmem>>, vector<1x32xf32>
    %13 = vector.shape_cast %8 : vector<32x32xf32> to vector<4x8x32xf32>
    %14 = arith.truncf %13 : vector<4x8x32xf32> to vector<4x8x32xbf16>
    %15 = vector.shape_cast %9 : vector<32x32xf32> to vector<4x8x32xf32>
    %16 = arith.truncf %15 : vector<4x8x32xf32> to vector<4x8x32xbf16>
    %17 = vector.shape_cast %10 : vector<32x32xf32> to vector<4x8x32xf32>
    %18 = arith.truncf %17 : vector<4x8x32xf32> to vector<4x8x32xbf16>
    %19 = vector.extract_strided_slice %14 {offsets = [0, 0, 0], sizes = [4, 8, 8], strides = [1, 1, 1]} : vector<4x8x32xbf16> to vector<4x8x8xbf16>
    %20 = vector.extract_strided_slice %14 {offsets = [0, 0, 8], sizes = [4, 8, 8], strides = [1, 1, 1]} : vector<4x8x32xbf16> to vector<4x8x8xbf16>
    %21 = vector.extract_strided_slice %14 {offsets = [0, 0, 16], sizes = [4, 8, 8], strides = [1, 1, 1]} : vector<4x8x32xbf16> to vector<4x8x8xbf16>
    %22 = vector.extract_strided_slice %14 {offsets = [0, 0, 24], sizes = [4, 8, 8], strides = [1, 1, 1]} : vector<4x8x32xbf16> to vector<4x8x8xbf16>
    %23 = vector.shape_cast %19 : vector<4x8x8xbf16> to vector<4x1x8x8xbf16>
    %24 = vector.shape_cast %20 : vector<4x8x8xbf16> to vector<4x1x8x8xbf16>
    %25 = vector.shape_cast %21 : vector<4x8x8xbf16> to vector<4x1x8x8xbf16>
    %26 = vector.shape_cast %22 : vector<4x8x8xbf16> to vector<4x1x8x8xbf16>
    %27 = tpu.concatenate %23, %24, %25, %26 in 1 : vector<4x1x8x8xbf16>, vector<4x1x8x8xbf16>, vector<4x1x8x8xbf16>, vector<4x1x8x8xbf16> -> vector<4x4x8x8xbf16>
    %28 = vector.shape_cast %27 : vector<4x4x8x8xbf16> to vector<16x8x8xbf16>
    %29 = vector.extract_strided_slice %16 {offsets = [0, 0, 0], sizes = [4, 8, 8], strides = [1, 1, 1]} : vector<4x8x32xbf16> to vector<4x8x8xbf16>
    %30 = vector.extract_strided_slice %16 {offsets = [0, 0, 8], sizes = [4, 8, 8], strides = [1, 1, 1]} : vector<4x8x32xbf16> to vector<4x8x8xbf16>
    %31 = vector.extract_strided_slice %16 {offsets = [0, 0, 16], sizes = [4, 8, 8], strides = [1, 1, 1]} : vector<4x8x32xbf16> to vector<4x8x8xbf16>
    %32 = vector.extract_strided_slice %16 {offsets = [0, 0, 24], sizes = [4, 8, 8], strides = [1, 1, 1]} : vector<4x8x32xbf16> to vector<4x8x8xbf16>
    %33 = vector.shape_cast %29 : vector<4x8x8xbf16> to vector<4x1x8x8xbf16>
    %34 = vector.shape_cast %30 : vector<4x8x8xbf16> to vector<4x1x8x8xbf16>
    %35 = vector.shape_cast %31 : vector<4x8x8xbf16> to vector<4x1x8x8xbf16>
    %36 = vector.shape_cast %32 : vector<4x8x8xbf16> to vector<4x1x8x8xbf16>
    %37 = tpu.concatenate %33, %34, %35, %36 in 1 : vector<4x1x8x8xbf16>, vector<4x1x8x8xbf16>, vector<4x1x8x8xbf16>, vector<4x1x8x8xbf16> -> vector<4x4x8x8xbf16>
    %38 = vector.shape_cast %37 : vector<4x4x8x8xbf16> to vector<16x8x8xbf16>
    %39 = vector.extract_strided_slice %18 {offsets = [0, 0, 0], sizes = [4, 8, 8], strides = [1, 1, 1]} : vector<4x8x32xbf16> to vector<4x8x8xbf16>
    %40 = vector.extract_strided_slice %18 {offsets = [0, 0, 8], sizes = [4, 8, 8], strides = [1, 1, 1]} : vector<4x8x32xbf16> to vector<4x8x8xbf16>
    %41 = vector.extract_strided_slice %18 {offsets = [0, 0, 16], sizes = [4, 8, 8], strides = [1, 1, 1]} : vector<4x8x32xbf16> to vector<4x8x8xbf16>
    %42 = vector.extract_strided_slice %18 {offsets = [0, 0, 24], sizes = [4, 8, 8], strides = [1, 1, 1]} : vector<4x8x32xbf16> to vector<4x8x8xbf16>
    %43 = vector.shape_cast %39 : vector<4x8x8xbf16> to vector<4x1x8x8xbf16>
    %44 = vector.shape_cast %40 : vector<4x8x8xbf16> to vector<4x1x8x8xbf16>
    %45 = vector.shape_cast %41 : vector<4x8x8xbf16> to vector<4x1x8x8xbf16>
    %46 = vector.shape_cast %42 : vector<4x8x8xbf16> to vector<4x1x8x8xbf16>
    %47 = tpu.concatenate %43, %44, %45, %46 in 1 : vector<4x1x8x8xbf16>, vector<4x1x8x8xbf16>, vector<4x1x8x8xbf16>, vector<4x1x8x8xbf16> -> vector<4x4x8x8xbf16>
    %48 = vector.shape_cast %47 : vector<4x4x8x8xbf16> to vector<16x8x8xbf16>
    "tpu.trace_start"() <{level = 10 : i32, message = "bqd,bkd->bqk"}> : () -> ()
    %cst_10 = arith.constant dense<0.000000e+00> : vector<16x8x8xf32>
    %49 = tpu.matmul %28, %38, %cst_10 {dimension_numbers = #tpu.dot_dimension_numbers<[2], [2], [1], [1], [0, 0, 0, 1, 1, 1], [0], [0]>} : vector<16x8x8xbf16>, vector<16x8x8xbf16>, vector<16x8x8xf32> -> vector<16x8x8xf32>
    "tpu.trace_stop"() : () -> ()
    %cst_11 = arith.constant dense<0xFF800000> : vector<16x8xf32>
    %50 = vector.multi_reduction <maximumf>, %49, %cst_11 [2] : vector<16x8x8xf32> to vector<16x8xf32>
    %51 = vector.shape_cast %50 : vector<16x8xf32> to vector<16x8x1xf32>
    %52 = vector.broadcast %51 : vector<16x8x1xf32> to vector<16x8x8xf32>
    %53 = arith.subf %49, %52 : vector<16x8x8xf32>
    %54 = math.exp %53 : vector<16x8x8xf32>
    %cst_12 = arith.constant dense<0.000000e+00> : vector<16x8xf32>
    %55 = vector.multi_reduction <add>, %54, %cst_12 [2] : vector<16x8x8xf32> to vector<16x8xf32>
    %56 = vector.shape_cast %55 : vector<16x8xf32> to vector<16x8x1xf32>
    %57 = tpu.reciprocal %56 {approx = true} : vector<16x8x1xf32> -> vector<16x8x1xf32>
    %58 = vector.broadcast %57 : vector<16x8x1xf32> to vector<16x8x8xf32>
    %59 = arith.mulf %54, %58 : vector<16x8x8xf32>
    %60 = arith.truncf %59 : vector<16x8x8xf32> to vector<16x8x8xbf16>
    "tpu.trace_start"() <{level = 10 : i32, message = "bqk,bkd->bqd"}> : () -> ()
    %cst_13 = arith.constant dense<0.000000e+00> : vector<16x8x8xf32>
    %61 = tpu.matmul %60, %48, %cst_13 {dimension_numbers = #tpu.dot_dimension_numbers<[2], [1], [1], [2], [0, 0, 0, 1, 1, 2], [0], [0]>} : vector<16x8x8xbf16>, vector<16x8x8xbf16>, vector<16x8x8xf32> -> vector<16x8x8xf32>
    "tpu.trace_stop"() : () -> ()
    %62 = vector.shape_cast %61 : vector<16x8x8xf32> to vector<4x4x8x8xf32>
    %63 = vector.extract_strided_slice %62 {offsets = [0, 0, 0, 0], sizes = [4, 1, 8, 8], strides = [1, 1, 1, 1]} : vector<4x4x8x8xf32> to vector<4x1x8x8xf32>
    %64 = vector.shape_cast %63 : vector<4x1x8x8xf32> to vector<4x8x8xf32>
    %65 = vector.extract_strided_slice %62 {offsets = [0, 1, 0, 0], sizes = [4, 1, 8, 8], strides = [1, 1, 1, 1]} : vector<4x4x8x8xf32> to vector<4x1x8x8xf32>
    %66 = vector.shape_cast %65 : vector<4x1x8x8xf32> to vector<4x8x8xf32>
    %67 = vector.extract_strided_slice %62 {offsets = [0, 2, 0, 0], sizes = [4, 1, 8, 8], strides = [1, 1, 1, 1]} : vector<4x4x8x8xf32> to vector<4x1x8x8xf32>
    %68 = vector.shape_cast %67 : vector<4x1x8x8xf32> to vector<4x8x8xf32>
    %69 = vector.extract_strided_slice %62 {offsets = [0, 3, 0, 0], sizes = [4, 1, 8, 8], strides = [1, 1, 1, 1]} : vector<4x4x8x8xf32> to vector<4x1x8x8xf32>
    %70 = vector.shape_cast %69 : vector<4x1x8x8xf32> to vector<4x8x8xf32>
    %71 = tpu.concatenate %64, %66, %68, %70 in 2 : vector<4x8x8xf32>, vector<4x8x8xf32>, vector<4x8x8xf32>, vector<4x8x8xf32> -> vector<4x8x32xf32>
    %72 = vector.shape_cast %71 : vector<4x8x32xf32> to vector<32x32xf32>
    %73 = arith.truncf %72 : vector<32x32xf32> to vector<32x32xbf16>
    %cst_14 = arith.constant dense<0.000000e+00> : vector<32x32xf32>
    %74 = tpu.matmul %73, %11, %cst_14 {dimension_numbers = #tpu.dot_dimension_numbers<[1], [0], [0], [1], [0, 0, 1, 1], [], []>} : vector<32x32xbf16>, vector<32x32xbf16>, vector<32x32xf32> -> vector<32x32xf32>
    %75 = vector.broadcast %12 : vector<1x32xf32> to vector<32x32xf32>
    %76 = arith.addf %74, %75 : vector<32x32xf32>
    %77 = vector.shape_cast %76 : vector<32x32xf32> to vector<4x8x32xf32>
    %c0_15 = arith.constant 0 : index
    %c0_16 = arith.constant 0 : index
    %c0_17 = arith.constant 0 : index
    %78 = vector.load %arg6[%c0_15, %c0_16, %c0_17] : memref<4x8x32xf32, #tpu.memory_space<vmem>>, vector<4x8x32xf32>
    tpu.vector_store %arg6[%c0_15, %c0_16, %c0_17], %77 {strides = array<i32>} : memref<4x8x32xf32, #tpu.memory_space<vmem>>, vector<4x8x32xf32>,
    %79 = vector.shape_cast %49 : vector<16x8x8xf32> to vector<4x4x8x8xf32>
    %c0_18 = arith.constant 0 : index
    %c0_19 = arith.constant 0 : index
    %c0_20 = arith.constant 0 : index
    %c0_21 = arith.constant 0 : index
    %80 = vector.load %arg7[%c0_18, %c0_19, %c0_20, %c0_21] : memref<4x4x8x8xf32, #tpu.memory_space<vmem>>, vector<4x4x8x8xf32>
    tpu.vector_store %arg7[%c0_18, %c0_19, %c0_20, %c0_21], %79 {strides = array<i32>} : memref<4x4x8x8xf32, #tpu.memory_space<vmem>>, vector<4x4x8x8xf32>,
    %81 = vector.shape_cast %59 : vector<16x8x8xf32> to vector<4x4x8x8xf32>
    %c0_22 = arith.constant 0 : index
    %c0_23 = arith.constant 0 : index
    %c0_24 = arith.constant 0 : index
    %c0_25 = arith.constant 0 : index
    %82 = vector.load %arg8[%c0_22, %c0_23, %c0_24, %c0_25] : memref<4x4x8x8xf32, #tpu.memory_space<vmem>>, vector<4x4x8x8xf32>
    tpu.vector_store %arg8[%c0_22, %c0_23, %c0_24, %c0_25], %81 {strides = array<i32>} : memref<4x4x8x8xf32, #tpu.memory_space<vmem>>, vector<4x4x8x8xf32>,
    return
  }
  func.func @transform_0(%arg0: i32) -> (i32, i32, i32) {
    %c0_i32 = arith.constant 0 : i32
    %c0_i32_0 = arith.constant 0 : i32
    %c0_i32_1 = arith.constant 0 : i32
    return %arg0, %c0_i32, %c0_i32_0 : i32, i32, i32
  }
  func.func @transform_1(%arg0: i32) -> (i32, i32) {
    %c0_i32 = arith.constant 0 : i32
    %c0_i32_0 = arith.constant 0 : i32
    %c0_i32_1 = arith.constant 0 : i32
    return %c0_i32, %c0_i32_0 : i32, i32
  }
  func.func @transform_2(%arg0: i32) -> (i32, i32) {
    %c0_i32 = arith.constant 0 : i32
    %c0_i32_0 = arith.constant 0 : i32
    %c0_i32_1 = arith.constant 0 : i32
    return %c0_i32, %c0_i32_0 : i32, i32
  }
  func.func @transform_3(%arg0: i32) -> (i32, i32) {
    %c0_i32 = arith.constant 0 : i32
    %c0_i32_0 = arith.constant 0 : i32
    %c0_i32_1 = arith.constant 0 : i32
    return %c0_i32, %c0_i32_0 : i32, i32
  }
  func.func @transform_4(%arg0: i32) -> (i32, i32) {
    %c0_i32 = arith.constant 0 : i32
    %c0_i32_0 = arith.constant 0 : i32
    %c0_i32_1 = arith.constant 0 : i32
    return %c0_i32, %c0_i32_0 : i32, i32
  }
  func.func @transform_5(%arg0: i32) -> (i32, i32, i32) {
    %c0_i32 = arith.constant 0 : i32
    %c0_i32_0 = arith.constant 0 : i32
    %c0_i32_1 = arith.constant 0 : i32
    return %arg0, %c0_i32, %c0_i32_0 : i32, i32, i32
  }
  func.func @transform_6(%arg0: i32) -> (i32, i32, i32, i32) {
    %c0_i32 = arith.constant 0 : i32
    %c0_i32_0 = arith.constant 0 : i32
    %c0_i32_1 = arith.constant 0 : i32
    %c0_i32_2 = arith.constant 0 : i32
    return %arg0, %c0_i32, %c0_i32_0, %c0_i32_1 : i32, i32, i32, i32
  }
  func.func @transform_7(%arg0: i32) -> (i32, i32, i32, i32) {
    %c0_i32 = arith.constant 0 : i32
    %c0_i32_0 = arith.constant 0 : i32
    %c0_i32_1 = arith.constant 0 : i32
    %c0_i32_2 = arith.constant 0 : i32
    return %arg0, %c0_i32, %c0_i32_0, %c0_i32_1 : i32, i32, i32, i32
  }
}

</mosaic_0001>

<llo_original>
// kernel: tpu_custom_call.1
$region0: #{tpu_custom_call.1}
  #allocation0 [shape = 'u32[]', space=smem, size = 0x4, offset = 0x4, fixed_abs, tag = 'smem constant byte address 0x4 - core index']
  #allocation1 [shape = 'u32[144,128]{1,0:T(1,128)}', space=vmem, size = 0x12000, scoped, tag = 'internal scratch']
  %s0 = inlined_call_operand.hbm [shape: f32[8,8,32], index: 0, kind: input, shape index: {}]
  %s1 = inlined_call_operand.hbm [shape: bf16[32,96], index: 1, kind: input, shape index: {}]
  %s2 = inlined_call_operand.vmem [shape: f32[1,96], index: 2, kind: input, shape index: {}]
  %s3 = inlined_call_operand.hbm [shape: bf16[32,32], index: 3, kind: input, shape index: {}]
  %s4 = inlined_call_operand.vmem [shape: f32[1,32], index: 4, kind: input, shape index: {}]
  %s5 = inlined_call_operand.hbm [shape: f32[8,8,32], index: 5, kind: output, shape index: {0}]
  %s6 = inlined_call_operand.hbm [shape: f32[8,4,8,8], index: 6, kind: output, shape index: {1}]
  %s7 = inlined_call_operand.hbm [shape: f32[8,4,8,8], index: 7, kind: output, shape index: {2}]
  %8 = xla_tuple %s5, %s6, %s7
  %s9 = sld [smem:[#allocation0]]
  $region81: #{tpu_custom_call.1} parent=0
    _
  %s11 = ssub.s32 1, %s9
  %s12 = scalar_select 0, %s11, %s9
  $region1: #{tpu_custom_call.1} parent=0
    #allocation2 [shape = 'u8[32768]{0}', space=vmem, size = 0x8000, scoped, tag = 'input window, operand 0']
    #allocation3 [shape = 's32[2]{0}', space=sflag, size = 0x8, scoped, tag = 'scoped memory for tpu_custom_call.1']
    #allocation4 [shape = 's32[2]{0}', space=sflag, size = 0x8, scoped, tag = 'scoped memory for tpu_custom_call.1']
    #allocation5 [shape = 'u8[8192]{0}', space=vmem, size = 0x2000, scoped, tag = 'input window, operand 1, single buffered']
    #allocation6 [shape = 's32[1]{0}', space=sflag, size = 0x4, scoped, tag = 'scoped memory for tpu_custom_call.1']
    #allocation7 [shape = 'u8[8192]{0}', space=vmem, size = 0x2000, scoped, tag = 'input window, operand 3, single buffered']
    #allocation8 [shape = 'u8[32768]{0}', space=vmem, size = 0x8000, scoped, tag = 'output window, operand 0']
    #allocation9 [shape = 'u8[131072]{0}', space=vmem, size = 0x20000, scoped, tag = 'output window, operand 1']
    #allocation10 [shape = 's32[2]{0}', space=sflag, size = 0x8, scoped, tag = 'scoped memory for tpu_custom_call.1']
    #allocation11 [shape = 'u8[131072]{0}', space=vmem, size = 0x20000, scoped, tag = 'output window, operand 2']
    %13 = vsyncpa [#allocation3], 0
    %s14 = scalar_lea.sflag [#allocation3], 1
    %15 = vsyncpa %s14, 0
    %16 = vsyncpa [#allocation6], 0
    %17 = vsyncpa [#allocation4], 0
    %s18 = scalar_lea.sflag [#allocation4], 1
    %19 = vsyncpa %s18, 0
    %20 = vsyncpa [#allocation10], 0
    %s21 = scalar_lea.sflag [#allocation10], 1
    %22 = vsyncpa %s21, 0
    loop: start=0, step=1, limit=4
    $region2: #{tpu_custom_call.1} parent=1 // loop_pre_header
      _
    $region3: #{tpu_custom_call.1} parent=1 // loop_header
      %s24 = sphi 0, %s28
      %p25 = scmp.ge.s32.totalorder %s24, 4
      %s34 = sphi 0, %s36
      %s37 = sphi 0, %s34
      %s38 = sphi 0, %s37
      %s54 = sphi 0, %s38
      %s58 = sphi 0, %s58
      %s60 = sphi 0, %s58
      %s61 = sphi 0, %s60
      %s75 = sphi 0, %s61
      %s79 = sphi 0, %s79
      %s81 = sphi 0, %s79
      %s82 = sphi 0, %s81
      %s96 = sphi 0, %s82
      %s100 = sphi 0, %s100
      %s102 = sphi 0, %s100
      %s103 = sphi 0, %s102
      %s117 = sphi 0, %s103
      %s121 = sphi 0, %s121
      %s123 = sphi 0, %s121
      %s124 = sphi 0, %s123
      %s138 = sphi 0, %s124
      %s144 = sphi 0, %s146
      %s147 = sphi 0, %s144
      %s148 = sphi 0, %s147
      %s164 = sphi 0, %s148
      %s170 = sphi 0, %s172
      %s173 = sphi 0, %s170
      %s174 = sphi 0, %s173
      %s190 = sphi 0, %s174
      %s196 = sphi 0, %s198
      %s199 = sphi 0, %s196
      %s200 = sphi 0, %s199
      %s216 = sphi 0, %s200
    $region4: #{tpu_custom_call.1} parent=1 // loop_header_branch
      %27 = sbr.rel (%p25) target = $region8
    $region5: #{tpu_custom_call.1} parent=1 // loop_body
      %s29 = ssub.s32 %s24, 1
      %s30 = ssub.s32 %s24, 2
      %s31 = sadd.s32 %s24, 1
      %s32 = ssub.s32 %s24, %s31
      %p33 = scmp.eq.s32.totalorder %s32, 0
      %s35 = sadd.s32 %s34, 1
      %s36 = scalar_select %p33, %s34, %s35
      %p39 = pneg %p33
      %p40 = scmp.eq.s32.totalorder %s24, 1
      %p41 = por %p39, %p40
      %p42 = scmp.ne.s32.totalorder %s34, %s37
      %p43 = scmp.eq.s32.totalorder %s24, 0
      %p44 = por %p42, %p43
      %p45 = scmp.ne.s32.totalorder %s34, %s37
      %p46 = scmp.eq.s32.totalorder %s29, 1
      %p47 = por %p45, %p46
      %p48 = scmp.ne.s32.totalorder %s37, %s38
      %p49 = scmp.eq.s32.totalorder %s29, 0
      %p50 = por %p48, %p49
      %p51 = scmp.ne.s32.totalorder %s37, %s38
      %p52 = scmp.eq.s32.totalorder %s30, 1
      %p53 = por %p51, %p52
      %p55 = scmp.ne.s32.totalorder %s38, %s54
      %p56 = scmp.eq.s32.totalorder %s30, 0
      %p57 = por %p55, %p56
      %s59 = sadd.s32 %s58, 1
      %p62 = scmp.eq.s32.totalorder %s24, 1
      %p63 = scmp.ne.s32.totalorder %s58, %s60
      %p64 = scmp.eq.s32.totalorder %s24, 0
      %p65 = por %p63, %p64
      %p66 = scmp.ne.s32.totalorder %s58, %s60
      %p67 = scmp.eq.s32.totalorder %s29, 1
      %p68 = por %p66, %p67
      %p69 = scmp.ne.s32.totalorder %s60, %s61
      %p70 = scmp.eq.s32.totalorder %s29, 0
      %p71 = por %p69, %p70
      %p72 = scmp.ne.s32.totalorder %s60, %s61
      %p73 = scmp.eq.s32.totalorder %s30, 1
      %p74 = por %p72, %p73
      %p76 = scmp.ne.s32.totalorder %s61, %s75
      %p77 = scmp.eq.s32.totalorder %s30, 0
      %p78 = por %p76, %p77
      %s80 = sadd.s32 %s79, 1
      %p83 = scmp.eq.s32.totalorder %s24, 1
      %p84 = scmp.ne.s32.totalorder %s79, %s81
      %p85 = scmp.eq.s32.totalorder %s24, 0
      %p86 = por %p84, %p85
      %p87 = scmp.ne.s32.totalorder %s79, %s81
      %p88 = scmp.eq.s32.totalorder %s29, 1
      %p89 = por %p87, %p88
      %p90 = scmp.ne.s32.totalorder %s81, %s82
      %p91 = scmp.eq.s32.totalorder %s29, 0
      %p92 = por %p90, %p91
      %p93 = scmp.ne.s32.totalorder %s81, %s82
      %p94 = scmp.eq.s32.totalorder %s30, 1
      %p95 = por %p93, %p94
      %p97 = scmp.ne.s32.totalorder %s82, %s96
      %p98 = scmp.eq.s32.totalorder %s30, 0
      %p99 = por %p97, %p98
      %s101 = sadd.s32 %s100, 1
      %p104 = scmp.eq.s32.totalorder %s24, 1
      %p105 = scmp.ne.s32.totalorder %s100, %s102
      %p106 = scmp.eq.s32.totalorder %s24, 0
      %p107 = por %p105, %p106
      %p108 = scmp.ne.s32.totalorder %s100, %s102
      %p109 = scmp.eq.s32.totalorder %s29, 1
      %p110 = por %p108, %p109
      %p111 = scmp.ne.s32.totalorder %s102, %s103
      %p112 = scmp.eq.s32.totalorder %s29, 0
      %p113 = por %p111, %p112
      %p114 = scmp.ne.s32.totalorder %s102, %s103
      %p115 = scmp.eq.s32.totalorder %s30, 1
      %p116 = por %p114, %p115
      %p118 = scmp.ne.s32.totalorder %s103, %s117
      %p119 = scmp.eq.s32.totalorder %s30, 0
      %p120 = por %p118, %p119
      %s122 = sadd.s32 %s121, 1
      %p125 = scmp.eq.s32.totalorder %s24, 1
      %p126 = scmp.ne.s32.totalorder %s121, %s123
      %p127 = scmp.eq.s32.totalorder %s24, 0
      %p128 = por %p126, %p127
      %p129 = scmp.ne.s32.totalorder %s121, %s123
      %p130 = scmp.eq.s32.totalorder %s29, 1
      %p131 = por %p129, %p130
      %p132 = scmp.ne.s32.totalorder %s123, %s124
      %p133 = scmp.eq.s32.totalorder %s29, 0
      %p134 = por %p132, %p133
      %p135 = scmp.ne.s32.totalorder %s123, %s124
      %p136 = scmp.eq.s32.totalorder %s30, 1
      %p137 = por %p135, %p136
      %p139 = scmp.ne.s32.totalorder %s124, %s138
      %p140 = scmp.eq.s32.totalorder %s30, 0
      %p141 = por %p139, %p140
      %s142 = ssub.s32 %s24, %s31
      %p143 = scmp.eq.s32.totalorder %s142, 0
      %s145 = sadd.s32 %s144, 1
      %s146 = scalar_select %p143, %s144, %s145
      %p149 = pneg %p143
      %p150 = scmp.eq.s32.totalorder %s24, 1
      %p151 = por %p149, %p150
      %p152 = scmp.ne.s32.totalorder %s144, %s147
      %p153 = scmp.eq.s32.totalorder %s24, 0
      %p154 = por %p152, %p153
      %p155 = scmp.ne.s32.totalorder %s144, %s147
      %p156 = scmp.eq.s32.totalorder %s29, 1
      %p157 = por %p155, %p156
      %p158 = scmp.ne.s32.totalorder %s147, %s148
      %p159 = scmp.eq.s32.totalorder %s29, 0
      %p160 = por %p158, %p159
      %p161 = scmp.ne.s32.totalorder %s147, %s148
      %p162 = scmp.eq.s32.totalorder %s30, 1
      %p163 = por %p161, %p162
      %p165 = scmp.ne.s32.totalorder %s148, %s164
      %p166 = scmp.eq.s32.totalorder %s30, 0
      %p167 = por %p165, %p166
      %s168 = ssub.s32 %s24, %s31
      %p169 = scmp.eq.s32.totalorder %s168, 0
      %s171 = sadd.s32 %s170, 1
      %s172 = scalar_select %p169, %s170, %s171
      %p175 = pneg %p169
      %p176 = scmp.eq.s32.totalorder %s24, 1
      %p177 = por %p175, %p176
      %p178 = scmp.ne.s32.totalorder %s170, %s173
      %p179 = scmp.eq.s32.totalorder %s24, 0
      %p180 = por %p178, %p179
      %p181 = scmp.ne.s32.totalorder %s170, %s173
      %p182 = scmp.eq.s32.totalorder %s29, 1
      %p183 = por %p181, %p182
      %p184 = scmp.ne.s32.totalorder %s173, %s174
      %p185 = scmp.eq.s32.totalorder %s29, 0
      %p186 = por %p184, %p185
      %p187 = scmp.ne.s32.totalorder %s173, %s174
      %p188 = scmp.eq.s32.totalorder %s30, 1
      %p189 = por %p187, %p188
      %p191 = scmp.ne.s32.totalorder %s174, %s190
      %p192 = scmp.eq.s32.totalorder %s30, 0
      %p193 = por %p191, %p192
      %s194 = ssub.s32 %s24, %s31
      %p195 = scmp.eq.s32.totalorder %s194, 0
      %s197 = sadd.s32 %s196, 1
      %s198 = scalar_select %p195, %s196, %s197
      %p201 = pneg %p195
      %p202 = scmp.eq.s32.totalorder %s24, 1
      %p203 = por %p201, %p202
      %p204 = scmp.ne.s32.totalorder %s196, %s199
      %p205 = scmp.eq.s32.totalorder %s24, 0
      %p206 = por %p204, %p205
      %p207 = scmp.ne.s32.totalorder %s196, %s199
      %p208 = scmp.eq.s32.totalorder %s29, 1
      %p209 = por %p207, %p208
      %p210 = scmp.ne.s32.totalorder %s199, %s200
      %p211 = scmp.eq.s32.totalorder %s29, 0
      %p212 = por %p210, %p211
      %p213 = scmp.ne.s32.totalorder %s199, %s200
      %p214 = scmp.eq.s32.totalorder %s30, 1
      %p215 = por %p213, %p214
      %p217 = scmp.ne.s32.totalorder %s200, %s216
      %p218 = scmp.eq.s32.totalorder %s30, 0
      %p219 = por %p217, %p218
      %p220 = scmp.le.s32.totalorder 1, %s24
      %p221 = scmp.lt.s32.totalorder %s24, 3
      %p222 = pnand %p220, %p221
      %p223 = pneg %p222
      // Predicated region
      $region9: #{tpu_custom_call.1} parent=5 // pred_check
        _
      $region10: #{tpu_custom_call.1} parent=5 // pred_check_branch
        %225 = sbr.rel (%p222) target = $region12
      $region11: #{tpu_custom_call.1} parent=5 // pred_region
        %s226 = ssub.s32 %s24, 1
        // Predicated region
        $region13: #{tpu_custom_call.1} parent=11 // pred_check
          %p227 = pneg %p71
        $region14: #{tpu_custom_call.1} parent=11 // pred_check_branch
          %229 = sbr.rel (%p227) target = $region16
        $region15: #{tpu_custom_call.1} parent=11 // pred_region
          %s231 = ssub.s32 256, 256
          %232 = vsyncadd [#allocation6], %s231
          %s233 = sshll.u32 [#allocation5], 4
          %s234 = int_to_ptr.vmem [resolvable:$true] %s233
          %239 = dma.hbm_to_vmem [thread:$0]  %s1, 256, %s234, [#allocation6], 64, 64, 4
        $region16: #{tpu_custom_call.1} parent=11 // pred_fallthru
          _
        // Predicated region
        $region17: #{tpu_custom_call.1} parent=11 // pred_check
          %p240 = pneg %p92
        $region18: #{tpu_custom_call.1} parent=11 // pred_check_branch
          %242 = sbr.rel (%p240) target = $region20
        $region19: #{tpu_custom_call.1} parent=11 // pred_region
          _
        $region20: #{tpu_custom_call.1} parent=11 // pred_fallthru
          _
        // Predicated region
        $region21: #{tpu_custom_call.1} parent=11 // pred_check
          %p243 = pneg %p113
        $region22: #{tpu_custom_call.1} parent=11 // pred_check_branch
          %245 = sbr.rel (%p243) target = $region24
        $region23: #{tpu_custom_call.1} parent=11 // pred_region
          %s247 = ssub.s32 256, 256
          %248 = vsyncadd [#allocation6], %s247
          %s249 = sshll.u32 [#allocation7], 4
          %s250 = int_to_ptr.vmem [resolvable:$true] %s249
          %255 = dma.hbm_to_vmem [thread:$0]  %s3, 256, %s250, [#allocation6], 64, 64, 4
        $region24: #{tpu_custom_call.1} parent=11 // pred_fallthru
          _
        // Predicated region
        $region25: #{tpu_custom_call.1} parent=11 // pred_check
          %p256 = pneg %p134
        $region26: #{tpu_custom_call.1} parent=11 // pred_check_branch
          %258 = sbr.rel (%p256) target = $region28
        $region27: #{tpu_custom_call.1} parent=11 // pred_region
          _
        $region28: #{tpu_custom_call.1} parent=11 // pred_fallthru
          _
      $region12: #{tpu_custom_call.1} parent=5 // pred_fallthru
        _
      %p259 = scmp.lt.s32.totalorder %s24, 2
      // Predicated region
      $region29: #{tpu_custom_call.1} parent=5 // pred_check
        %p260 = pneg %p259
      $region30: #{tpu_custom_call.1} parent=5 // pred_check_branch
        %262 = sbr.rel (%p260) target = $region32
      $region31: #{tpu_custom_call.1} parent=5 // pred_region
        // Predicated region
        $region33: #{tpu_custom_call.1} parent=31 // pred_check
          %p263 = pneg %p44
        $region34: #{tpu_custom_call.1} parent=31 // pred_check_branch
          %265 = sbr.rel (%p263) target = $region36
        $region35: #{tpu_custom_call.1} parent=31 // pred_region
          %s266 = sand.u32 %s34, 1
          %s267 = scalar_lea.sflag [#allocation3], %s266
          %s268 = sand.u32 %s34, 1
          %s269 = smul.addr %s268, 32
          %s270 = scalar_lea.vmem [#allocation2], %s269
          %s271 = smul.u32 4, %s24
          %s273 = ssub.s32 512, 512
          %274 = vsyncadd %s267, %s273
          %s275 = smul.addr %s271, 128
          %s276 = scalar_lea.hbm %s0, %s275
          %s277 = sshll.u32 %s270, 4
          %s278 = int_to_ptr.vmem [resolvable:$true] %s277
          %283 = dma.hbm_to_vmem [thread:$0]  %s276, 512, %s278, %s267, 128, 128, 8
        $region36: #{tpu_custom_call.1} parent=31 // pred_fallthru
          _
      $region32: #{tpu_custom_call.1} parent=5 // pred_fallthru
        _
      %p284 = scmp.le.s32.totalorder 1, %s24
      %p285 = scmp.lt.s32.totalorder %s24, 3
      %p286 = pnand %p284, %p285
      %p287 = pneg %p286
      // Predicated region
      $region37: #{tpu_custom_call.1} parent=5 // pred_check
        _
      $region38: #{tpu_custom_call.1} parent=5 // pred_check_branch
        %289 = sbr.rel (%p286) target = $region40
      $region39: #{tpu_custom_call.1} parent=5 // pred_region
        %s290 = ssub.s32 %s24, 1
        %s291 = sand.u32 %s37, 1
        %s292 = scalar_lea.sflag [#allocation3], %s291
        %s293 = sand.u32 %s37, 1
        %s294 = smul.addr %s293, 32
        %s295 = scalar_lea.vmem [#allocation2], %s294
        // Predicated region
        $region41: #{tpu_custom_call.1} parent=39 // pred_check
          %p296 = pneg %p50
        $region42: #{tpu_custom_call.1} parent=39 // pred_check_branch
          %298 = sbr.rel (%p296) target = $region44
        $region43: #{tpu_custom_call.1} parent=39 // pred_region
          %299 = dma.done %s292, 512
        $region44: #{tpu_custom_call.1} parent=39 // pred_fallthru
          _
        // Predicated region
        $region45: #{tpu_custom_call.1} parent=39 // pred_check
          %p300 = pneg %p71
        $region46: #{tpu_custom_call.1} parent=39 // pred_check_branch
          %302 = sbr.rel (%p300) target = $region48
        $region47: #{tpu_custom_call.1} parent=39 // pred_region
          %303 = dma.done [#allocation6], 256
        $region48: #{tpu_custom_call.1} parent=39 // pred_fallthru
          _
        // Predicated region
        $region49: #{tpu_custom_call.1} parent=39 // pred_check
          %p304 = pneg %p113
        $region50: #{tpu_custom_call.1} parent=39 // pred_check_branch
          %306 = sbr.rel (%p304) target = $region52
        $region51: #{tpu_custom_call.1} parent=39 // pred_region
          %307 = dma.done [#allocation6], 256
        $region52: #{tpu_custom_call.1} parent=39 // pred_fallthru
          _
        %s308 = sand.u32 %s37, 1
        %s309 = scalar_lea.sflag [#allocation3], %s308
        %s310 = sand.u32 %s37, 1
        %s311 = smul.addr %s310, 32
        %s312 = scalar_lea.vmem [#allocation2], %s311
        %p313 = pneg %p50
        %p314 = pneg %p47
        %p315 = pneg %p71
        %p316 = pneg %p68
        %p317 = pneg %p92
        %p318 = pneg %p89
        %p319 = pneg %p113
        %p320 = pneg %p110
        %p321 = pneg %p134
        %p322 = pneg %p131
        %p323 = pneg %p160
        %p324 = pneg %p157
        %s325 = sand.u32 %s147, 1
        %s326 = scalar_lea.sflag [#allocation4], %s325
        %s327 = sand.u32 %s147, 1
        %s328 = smul.addr %s327, 32
        %s329 = scalar_lea.vmem [#allocation8], %s328
        %p330 = pneg %p186
        %p331 = pneg %p183
        %s332 = sand.u32 %s29, 1
        %s333 = scalar_lea.sflag [#allocation10], %s332
        %s334 = sand.u32 %s173, 1
        %s335 = smul.addr %s334, 128
        %s336 = scalar_lea.vmem [#allocation9], %s335
        %p337 = pneg %p212
        %p338 = pneg %p209
        %s339 = sand.u32 %s29, 1
        %s340 = scalar_lea.sflag [#allocation10], %s339
        %s341 = sand.u32 %s199, 1
        %s342 = smul.addr %s341, 128
        %s343 = scalar_lea.vmem [#allocation11], %s342
        %s344 = smul.u32 4, %s29
        %s345 = smul.u32 4, %s29
        %s346 = smul.u32 4, %s29
        %s347 = smul.u32 4, %s29
        %v349 = vld [vmem:[%s295] sm:$0xff]
        %v350 = vld [vmem:[%s295 + $0x8] sm:$0xff]
        %v351 = vld [vmem:[%s295 + $0x10] sm:$0xff]
        %v352 = vld [vmem:[%s295 + $0x18] sm:$0xff]
        %v353 = vpack.c.bf16 %v350, %v349
        %v354 = vpack.c.bf16 %v352, %v351
        %v355 = vld [vmem:[#allocation5] sm:$0xf]
        %v356 = vld [vmem:[#allocation5 + $0x4] sm:$0xf]
        %v357 = vld [vmem:[#allocation5 + $0x8] sm:$0xf]
        %v358 = vld [vmem:[#allocation5 + $0xc] sm:$0xf]
        %v359 = vld [vmem:[%s2] sm:$0x1]
        %v361 = vlaneseq
        %v362 = vshrl.u32 %v361, 7
        %v363 = vsub.s32 0, %v362
        %v364 = vrot.slane %v359, %v363
        %v370 = vunpack.c.l.b16 %v355
        %v371 = vunpack.c.l.b16 %v356
        %v372 = vunpack.c.l.b16 %v357
        %v373 = vunpack.c.l.b16 %v358
        %v374 = vpack.c.b16 %v371, %v370
        %v375 = vpack.c.b16 %v373, %v372
        %vm378 = vcmask 261120
        %v380 = vsel %vm378, %v353, 0
        %v383 = vsel %vm378, %v354, 0
        %385 = vmatprep.subr.bf16.mxu0 0
        %386 = vmatpush1.bf16.msra.mxu0 %v374
        %387 = vmatprep.subr.bf16.mxu0 0
        %388 = vmatpush1.bf16.msra.mxu0 %v375
        %389 = vmatprep.subr.bf16.mxu0 0
        %390 = vmatpush1.bf16.msra.mxu0 0
        %391 = vmatprep.subr.bf16.mxu0 0
        %392 = vmatpush1.bf16.msra.mxu0 0
        %393 = vmatprep.subr.bf16.mxu0 0
        %394 = vmatpush1.bf16.msra.mxu0 0
        %395 = vmatprep.subr.bf16.mxu0 0
        %396 = vmatpush1.bf16.msra.mxu0 0
        %397 = vmatprep.subr.bf16.mxu0 0
        %398 = vmatpush1.bf16.msra.mxu0 0
        %399 = vmatprep.subr.bf16.mxu0 0
        %400 = vmatpush1.bf16.msra.mxu0 0
        %401 = vmatprep.subr.bf16.mxu0 0
        %402 = vmatpush1.bf16.msra.mxu0 0
        %403 = vmatprep.subr.bf16.mxu0 0
        %404 = vmatpush1.bf16.msra.mxu0 0
        %405 = vmatprep.subr.bf16.mxu0 0
        %406 = vmatpush1.bf16.msra.mxu0 0
        %407 = vmatprep.subr.bf16.mxu0 0
        %408 = vmatpush1.bf16.msra.mxu0 0
        %409 = vmatprep.subr.bf16.mxu0 0
        %410 = vmatpush1.bf16.msra.mxu0 0
        %411 = vmatprep.subr.bf16.mxu0 0
        %412 = vmatpush1.bf16.msra.mxu0 0
        %413 = vmatprep.subr.bf16.mxu0 0
        %414 = vmatpush1.bf16.msra.mxu0 0
        %415 = vmatprep.subr.bf16.mxu0 0
        %416 = vmatpush1.bf16.msra.mxu0 0
        %417 = vmatprep.mubr.bf16.mxu0 0
        %418 = vmatmul.mubr.bf16.gmra.mrb[0].mxu0 %v380
        %v419 = vpop.f32.mrb[0].mxu0
        %v420 = vadd.f32 %v364, %v419
        %v421 = vpop.f32.mrb[0].mxu0
        %v422 = vpop.f32.mrb[0].mxu0
        %v423 = vadd.f32 %v364, %v422
        %v424 = vpop.f32.mrb[0].mxu0
        %425 = vmatprep.mubr.bf16.mxu0 0
        %426 = vmatmul.mubr.bf16.gmra.mrb[0].mxu0 %v383
        %v427 = vpop.f32.mrb[0].mxu0
        %v428 = vadd.f32 %v364, %v427
        %v429 = vpop.f32.mrb[0].mxu0
        %v430 = vpop.f32.mrb[0].mxu0
        %v431 = vadd.f32 %v364, %v430
        %v432 = vpop.f32.mrb[0].mxu0
        %433 = vdwg.mxu0
        %v434 = vld [vmem:[#allocation7] sm:$0xf]
        %v435 = vld [vmem:[#allocation7 + $0x4] sm:$0xf]
        %v436 = vld [vmem:[#allocation7 + $0x8] sm:$0xf]
        %v437 = vld [vmem:[#allocation7 + $0xc] sm:$0xf]
        %v438 = vld [vmem:[%s4] sm:$0x1]
        %v439 = vpack.c.bf16 %v420, %v420
        %v440 = vpack.c.bf16 %v423, %v423
        %v441 = vpack.c.bf16 %v428, %v428
        %v442 = vpack.c.bf16 %v431, %v431
        %447 = vrot.lane.b32.xlu0 %v439, 120
        %v448 = vpop.permute.xlu0 %447
        %449 = vrot.lane.b32.xlu0 %v440, 120
        %v450 = vpop.permute.xlu0 %449
        %451 = vrot.lane.b32.xlu0 %v441, 120
        %v452 = vpop.permute.xlu0 %451
        %453 = vrot.lane.b32.xlu0 %v442, 120
        %v454 = vpop.permute.xlu0 %453
        %455 = vrot.lane.b32.xlu0 %v439, 112
        %v456 = vpop.permute.xlu0 %455
        %457 = vrot.lane.b32.xlu0 %v440, 112
        %v458 = vpop.permute.xlu0 %457
        %459 = vrot.lane.b32.xlu0 %v441, 112
        %v460 = vpop.permute.xlu0 %459
        %461 = vrot.lane.b32.xlu0 %v442, 112
        %v462 = vpop.permute.xlu0 %461
        %463 = vrot.lane.b32.xlu0 %v439, 104
        %v464 = vpop.permute.xlu0 %463
        %465 = vrot.lane.b32.xlu0 %v440, 104
        %v466 = vpop.permute.xlu0 %465
        %467 = vrot.lane.b32.xlu0 %v441, 104
        %v468 = vpop.permute.xlu0 %467
        %469 = vrot.lane.b32.xlu0 %v442, 104
        %v470 = vpop.permute.xlu0 %469
        %471 = vrot.lane.b32.xlu0 %v439, 96
        %v472 = vpop.permute.xlu0 %471
        %vm473 = vcmask 64512
        %v475 = vsel %vm473, %v439, 0
        %v478 = vsel %vm473, %v472, 0
        %480 = vmatprep.subr.bf16.mxu0 0
        %481 = vmatpush1.bf16.xpose.msra.mxu0 %v478
        %482 = vmatprep.subr.bf16.mxu0 0
        %483 = vmatpush1.bf16.xpose.msra.mxu0 0
        %484 = vmatprep.subr.bf16.mxu0 0
        %485 = vmatpush1.bf16.xpose.msra.mxu0 0
        %486 = vmatprep.subr.bf16.mxu0 0
        %487 = vmatpush1.bf16.xpose.msra.mxu0 0
        %488 = vmatprep.subr.bf16.mxu0 0
        %489 = vmatpush1.bf16.xpose.msra.mxu0 0
        %490 = vmatprep.subr.bf16.mxu0 0
        %491 = vmatpush1.bf16.xpose.msra.mxu0 0
        %492 = vmatprep.subr.bf16.mxu0 0
        %493 = vmatpush1.bf16.xpose.msra.mxu0 0
        %494 = vmatprep.subr.bf16.mxu0 0
        %495 = vmatpush1.bf16.xpose.msra.mxu0 0
        %496 = vmatprep.subr.bf16.mxu0 0
        %497 = vmatpush1.bf16.xpose.msra.mxu0 0
        %498 = vmatprep.subr.bf16.mxu0 0
        %499 = vmatpush1.bf16.xpose.msra.mxu0 0
        %500 = vmatprep.subr.bf16.mxu0 0
        %501 = vmatpush1.bf16.xpose.msra.mxu0 0
        %502 = vmatprep.subr.bf16.mxu0 0
        %503 = vmatpush1.bf16.xpose.msra.mxu0 0
        %504 = vmatprep.subr.bf16.mxu0 0
        %505 = vmatpush1.bf16.xpose.msra.mxu0 0
        %506 = vmatprep.subr.bf16.mxu0 0
        %507 = vmatpush1.bf16.xpose.msra.mxu0 0
        %508 = vmatprep.subr.bf16.mxu0 0
        %509 = vmatpush1.bf16.xpose.msra.mxu0 0
        %510 = vmatprep.subr.bf16.mxu0 0
        %511 = vmatpush1.bf16.xpose.msra.mxu0 0
        %512 = vmatprep.mubr.bf16.mxu0 0
        %513 = vmatmul.mubr.bf16.gmra.mrb[0].mxu0 %v475
        %v514 = vpop.f32.mrb[0].mxu0
        %v515 = vadd.f32 0.0, %v514
        %v516 = vpop.f32.mrb[0].mxu0
        %v517 = vpop.f32.mrb[0].mxu0
        %v518 = vpop.f32.mrb[0].mxu0
        %519 = vdwg.mxu0
        %520 = vrot.lane.b32.xlu0 %v448, 96
        %v521 = vpop.permute.xlu0 %520
        %v523 = vsel %vm473, %v448, 0
        %v526 = vsel %vm473, %v521, 0
        %528 = vmatprep.subr.bf16.mxu0 0
        %529 = vmatpush1.bf16.xpose.msra.mxu0 %v526
        %530 = vmatprep.subr.bf16.mxu0 0
        %531 = vmatpush1.bf16.xpose.msra.mxu0 0
        %532 = vmatprep.subr.bf16.mxu0 0
        %533 = vmatpush1.bf16.xpose.msra.mxu0 0
        %534 = vmatprep.subr.bf16.mxu0 0
        %535 = vmatpush1.bf16.xpose.msra.mxu0 0
        %536 = vmatprep.subr.bf16.mxu0 0
        %537 = vmatpush1.bf16.xpose.msra.mxu0 0
        %538 = vmatprep.subr.bf16.mxu0 0
        %539 = vmatpush1.bf16.xpose.msra.mxu0 0
        %540 = vmatprep.subr.bf16.mxu0 0
        %541 = vmatpush1.bf16.xpose.msra.mxu0 0
        %542 = vmatprep.subr.bf16.mxu0 0
        %543 = vmatpush1.bf16.xpose.msra.mxu0 0
        %544 = vmatprep.subr.bf16.mxu0 0
        %545 = vmatpush1.bf16.xpose.msra.mxu0 0
        %546 = vmatprep.subr.bf16.mxu0 0
        %547 = vmatpush1.bf16.xpose.msra.mxu0 0
        %548 = vmatprep.subr.bf16.mxu0 0
        %549 = vmatpush1.bf16.xpose.msra.mxu0 0
        %550 = vmatprep.subr.bf16.mxu0 0
        %551 = vmatpush1.bf16.xpose.msra.mxu0 0
        %552 = vmatprep.subr.bf16.mxu0 0
        %553 = vmatpush1.bf16.xpose.msra.mxu0 0
        %554 = vmatprep.subr.bf16.mxu0 0
        %555 = vmatpush1.bf16.xpose.msra.mxu0 0
        %556 = vmatprep.subr.bf16.mxu0 0
        %557 = vmatpush1.bf16.xpose.msra.mxu0 0
        %558 = vmatprep.subr.bf16.mxu0 0
        %559 = vmatpush1.bf16.xpose.msra.mxu0 0
        %560 = vmatprep.mubr.bf16.mxu0 0
        %561 = vmatmul.mubr.bf16.gmra.mrb[0].mxu0 %v523
        %v562 = vpop.f32.mrb[0].mxu0
        %v563 = vadd.f32 0.0, %v562
        %v564 = vpop.f32.mrb[0].mxu0
        %v565 = vpop.f32.mrb[0].mxu0
        %v566 = vpop.f32.mrb[0].mxu0
        %567 = vdwg.mxu0
        %568 = vrot.lane.b32.xlu0 %v456, 96
        %v569 = vpop.permute.xlu0 %568
        %v571 = vsel %vm473, %v456, 0
        %v574 = vsel %vm473, %v569, 0
        %576 = vmatprep.subr.bf16.mxu0 0
        %577 = vmatpush1.bf16.xpose.msra.mxu0 %v574
        %578 = vmatprep.subr.bf16.mxu0 0
        %579 = vmatpush1.bf16.xpose.msra.mxu0 0
        %580 = vmatprep.subr.bf16.mxu0 0
        %581 = vmatpush1.bf16.xpose.msra.mxu0 0
        %582 = vmatprep.subr.bf16.mxu0 0
        %583 = vmatpush1.bf16.xpose.msra.mxu0 0
        %584 = vmatprep.subr.bf16.mxu0 0
        %585 = vmatpush1.bf16.xpose.msra.mxu0 0
        %586 = vmatprep.subr.bf16.mxu0 0
        %587 = vmatpush1.bf16.xpose.msra.mxu0 0
        %588 = vmatprep.subr.bf16.mxu0 0
        %589 = vmatpush1.bf16.xpose.msra.mxu0 0
        %590 = vmatprep.subr.bf16.mxu0 0
        %591 = vmatpush1.bf16.xpose.msra.mxu0 0
        %592 = vmatprep.subr.bf16.mxu0 0
        %593 = vmatpush1.bf16.xpose.msra.mxu0 0
        %594 = vmatprep.subr.bf16.mxu0 0
        %595 = vmatpush1.bf16.xpose.msra.mxu0 0
        %596 = vmatprep.subr.bf16.mxu0 0
        %597 = vmatpush1.bf16.xpose.msra.mxu0 0
        %598 = vmatprep.subr.bf16.mxu0 0
        %599 = vmatpush1.bf16.xpose.msra.mxu0 0
        %600 = vmatprep.subr.bf16.mxu0 0
        %601 = vmatpush1.bf16.xpose.msra.mxu0 0
        %602 = vmatprep.subr.bf16.mxu0 0
        %603 = vmatpush1.bf16.xpose.msra.mxu0 0
        %604 = vmatprep.subr.bf16.mxu0 0
        %605 = vmatpush1.bf16.xpose.msra.mxu0 0
        %606 = vmatprep.subr.bf16.mxu0 0
        %607 = vmatpush1.bf16.xpose.msra.mxu0 0
        %608 = vmatprep.mubr.bf16.mxu0 0
        %609 = vmatmul.mubr.bf16.gmra.mrb[0].mxu0 %v571
        %v610 = vpop.f32.mrb[0].mxu0
        %v611 = vadd.f32 0.0, %v610
        %v612 = vpop.f32.mrb[0].mxu0
        %v613 = vpop.f32.mrb[0].mxu0
        %v614 = vpop.f32.mrb[0].mxu0
        %615 = vdwg.mxu0
        %616 = vrot.lane.b32.xlu0 %v464, 96
        %v617 = vpop.permute.xlu0 %616
        %v619 = vsel %vm473, %v464, 0
        %v622 = vsel %vm473, %v617, 0
        %624 = vmatprep.subr.bf16.mxu0 0
        %625 = vmatpush1.bf16.xpose.msra.mxu0 %v622
        %626 = vmatprep.subr.bf16.mxu0 0
        %627 = vmatpush1.bf16.xpose.msra.mxu0 0
        %628 = vmatprep.subr.bf16.mxu0 0
        %629 = vmatpush1.bf16.xpose.msra.mxu0 0
        %630 = vmatprep.subr.bf16.mxu0 0
        %631 = vmatpush1.bf16.xpose.msra.mxu0 0
        %632 = vmatprep.subr.bf16.mxu0 0
        %633 = vmatpush1.bf16.xpose.msra.mxu0 0
        %634 = vmatprep.subr.bf16.mxu0 0
        %635 = vmatpush1.bf16.xpose.msra.mxu0 0
        %636 = vmatprep.subr.bf16.mxu0 0
        %637 = vmatpush1.bf16.xpose.msra.mxu0 0
        %638 = vmatprep.subr.bf16.mxu0 0
        %639 = vmatpush1.bf16.xpose.msra.mxu0 0
        %640 = vmatprep.subr.bf16.mxu0 0
        %641 = vmatpush1.bf16.xpose.msra.mxu0 0
        %642 = vmatprep.subr.bf16.mxu0 0
        %643 = vmatpush1.bf16.xpose.msra.mxu0 0
        %644 = vmatprep.subr.bf16.mxu0 0
        %645 = vmatpush1.bf16.xpose.msra.mxu0 0
        %646 = vmatprep.subr.bf16.mxu0 0
        %647 = vmatpush1.bf16.xpose.msra.mxu0 0
        %648 = vmatprep.subr.bf16.mxu0 0
        %649 = vmatpush1.bf16.xpose.msra.mxu0 0
        %650 = vmatprep.subr.bf16.mxu0 0
        %651 = vmatpush1.bf16.xpose.msra.mxu0 0
        %652 = vmatprep.subr.bf16.mxu0 0
        %653 = vmatpush1.bf16.xpose.msra.mxu0 0
        %654 = vmatprep.subr.bf16.mxu0 0
        %655 = vmatpush1.bf16.xpose.msra.mxu0 0
        %656 = vmatprep.mubr.bf16.mxu0 0
        %657 = vmatmul.mubr.bf16.gmra.mrb[0].mxu0 %v619
        %v658 = vpop.f32.mrb[0].mxu0
        %v659 = vadd.f32 0.0, %v658
        %v660 = vpop.f32.mrb[0].mxu0
        %v661 = vpop.f32.mrb[0].mxu0
        %v662 = vpop.f32.mrb[0].mxu0
        %663 = vdwg.mxu0
        %664 = vrot.lane.b32.xlu0 %v440, 96
        %v665 = vpop.permute.xlu0 %664
        %v667 = vsel %vm473, %v440, 0
        %v670 = vsel %vm473, %v665, 0
        %672 = vmatprep.subr.bf16.mxu0 0
        %673 = vmatpush1.bf16.xpose.msra.mxu0 %v670
        %674 = vmatprep.subr.bf16.mxu0 0
        %675 = vmatpush1.bf16.xpose.msra.mxu0 0
        %676 = vmatprep.subr.bf16.mxu0 0
        %677 = vmatpush1.bf16.xpose.msra.mxu0 0
        %678 = vmatprep.subr.bf16.mxu0 0
        %679 = vmatpush1.bf16.xpose.msra.mxu0 0
        %680 = vmatprep.subr.bf16.mxu0 0
        %681 = vmatpush1.bf16.xpose.msra.mxu0 0
        %682 = vmatprep.subr.bf16.mxu0 0
        %683 = vmatpush1.bf16.xpose.msra.mxu0 0
        %684 = vmatprep.subr.bf16.mxu0 0
        %685 = vmatpush1.bf16.xpose.msra.mxu0 0
        %686 = vmatprep.subr.bf16.mxu0 0
        %687 = vmatpush1.bf16.xpose.msra.mxu0 0
        %688 = vmatprep.subr.bf16.mxu0 0
        %689 = vmatpush1.bf16.xpose.msra.mxu0 0
        %690 = vmatprep.subr.bf16.mxu0 0
        %691 = vmatpush1.bf16.xpose.msra.mxu0 0
        %692 = vmatprep.subr.bf16.mxu0 0
        %693 = vmatpush1.bf16.xpose.msra.mxu0 0
        %694 = vmatprep.subr.bf16.mxu0 0
        %695 = vmatpush1.bf16.xpose.msra.mxu0 0
        %696 = vmatprep.subr.bf16.mxu0 0
        %697 = vmatpush1.bf16.xpose.msra.mxu0 0
        %698 = vmatprep.subr.bf16.mxu0 0
        %699 = vmatpush1.bf16.xpose.msra.mxu0 0
        %700 = vmatprep.subr.bf16.mxu0 0
        %701 = vmatpush1.bf16.xpose.msra.mxu0 0
        %702 = vmatprep.subr.bf16.mxu0 0
        %703 = vmatpush1.bf16.xpose.msra.mxu0 0
        %704 = vmatprep.mubr.bf16.mxu0 0
        %705 = vmatmul.mubr.bf16.gmra.mrb[0].mxu0 %v667
        %v706 = vpop.f32.mrb[0].mxu0
        %v707 = vadd.f32 0.0, %v706
        %v708 = vpop.f32.mrb[0].mxu0
        %v709 = vpop.f32.mrb[0].mxu0
        %v710 = vpop.f32.mrb[0].mxu0
        %711 = vdwg.mxu0
        %712 = vrot.lane.b32.xlu0 %v450, 96
        %v713 = vpop.permute.xlu0 %712
        %v715 = vsel %vm473, %v450, 0
        %v718 = vsel %vm473, %v713, 0
        %720 = vmatprep.subr.bf16.mxu0 0
        %721 = vmatpush1.bf16.xpose.msra.mxu0 %v718
        %722 = vmatprep.subr.bf16.mxu0 0
        %723 = vmatpush1.bf16.xpose.msra.mxu0 0
        %724 = vmatprep.subr.bf16.mxu0 0
        %725 = vmatpush1.bf16.xpose.msra.mxu0 0
        %726 = vmatprep.subr.bf16.mxu0 0
        %727 = vmatpush1.bf16.xpose.msra.mxu0 0
        %728 = vmatprep.subr.bf16.mxu0 0
        %729 = vmatpush1.bf16.xpose.msra.mxu0 0
        %730 = vmatprep.subr.bf16.mxu0 0
        %731 = vmatpush1.bf16.xpose.msra.mxu0 0
        %732 = vmatprep.subr.bf16.mxu0 0
        %733 = vmatpush1.bf16.xpose.msra.mxu0 0
        %734 = vmatprep.subr.bf16.mxu0 0
        %735 = vmatpush1.bf16.xpose.msra.mxu0 0
        %736 = vmatprep.subr.bf16.mxu0 0
        %737 = vmatpush1.bf16.xpose.msra.mxu0 0
        %738 = vmatprep.subr.bf16.mxu0 0
        %739 = vmatpush1.bf16.xpose.msra.mxu0 0
        %740 = vmatprep.subr.bf16.mxu0 0
        %741 = vmatpush1.bf16.xpose.msra.mxu0 0
        %742 = vmatprep.subr.bf16.mxu0 0
        %743 = vmatpush1.bf16.xpose.msra.mxu0 0
        %744 = vmatprep.subr.bf16.mxu0 0
        %745 = vmatpush1.bf16.xpose.msra.mxu0 0
        %746 = vmatprep.subr.bf16.mxu0 0
        %747 = vmatpush1.bf16.xpose.msra.mxu0 0
        %748 = vmatprep.subr.bf16.mxu0 0
        %749 = vmatpush1.bf16.xpose.msra.mxu0 0
        %750 = vmatprep.subr.bf16.mxu0 0
        %751 = vmatpush1.bf16.xpose.msra.mxu0 0
        %752 = vmatprep.mubr.bf16.mxu0 0
        %753 = vmatmul.mubr.bf16.gmra.mrb[0].mxu0 %v715
        %v754 = vpop.f32.mrb[0].mxu0
        %v755 = vadd.f32 0.0, %v754
        %v756 = vpop.f32.mrb[0].mxu0
        %v757 = vpop.f32.mrb[0].mxu0
        %v758 = vpop.f32.mrb[0].mxu0
        %759 = vdwg.mxu0
        %760 = vrot.lane.b32.xlu0 %v458, 96
        %v761 = vpop.permute.xlu0 %760
        %v763 = vsel %vm473, %v458, 0
        %v766 = vsel %vm473, %v761, 0
        %768 = vmatprep.subr.bf16.mxu0 0
        %769 = vmatpush1.bf16.xpose.msra.mxu0 %v766
        %770 = vmatprep.subr.bf16.mxu0 0
        %771 = vmatpush1.bf16.xpose.msra.mxu0 0
        %772 = vmatprep.subr.bf16.mxu0 0
        %773 = vmatpush1.bf16.xpose.msra.mxu0 0
        %774 = vmatprep.subr.bf16.mxu0 0
        %775 = vmatpush1.bf16.xpose.msra.mxu0 0
        %776 = vmatprep.subr.bf16.mxu0 0
        %777 = vmatpush1.bf16.xpose.msra.mxu0 0
        %778 = vmatprep.subr.bf16.mxu0 0
        %779 = vmatpush1.bf16.xpose.msra.mxu0 0
        %780 = vmatprep.subr.bf16.mxu0 0
        %781 = vmatpush1.bf16.xpose.msra.mxu0 0
        %782 = vmatprep.subr.bf16.mxu0 0
        %783 = vmatpush1.bf16.xpose.msra.mxu0 0
        %784 = vmatprep.subr.bf16.mxu0 0
        %785 = vmatpush1.bf16.xpose.msra.mxu0 0
        %786 = vmatprep.subr.bf16.mxu0 0
        %787 = vmatpush1.bf16.xpose.msra.mxu0 0
        %788 = vmatprep.subr.bf16.mxu0 0
        %789 = vmatpush1.bf16.xpose.msra.mxu0 0
        %790 = vmatprep.subr.bf16.mxu0 0
        %791 = vmatpush1.bf16.xpose.msra.mxu0 0
        %792 = vmatprep.subr.bf16.mxu0 0
        %793 = vmatpush1.bf16.xpose.msra.mxu0 0
        %794 = vmatprep.subr.bf16.mxu0 0
        %795 = vmatpush1.bf16.xpose.msra.mxu0 0
        %796 = vmatprep.subr.bf16.mxu0 0
        %797 = vmatpush1.bf16.xpose.msra.mxu0 0
        %798 = vmatprep.subr.bf16.mxu0 0
        %799 = vmatpush1.bf16.xpose.msra.mxu0 0
        %800 = vmatprep.mubr.bf16.mxu0 0
        %801 = vmatmul.mubr.bf16.gmra.mrb[0].mxu0 %v763
        %v802 = vpop.f32.mrb[0].mxu0
        %v803 = vadd.f32 0.0, %v802
        %v804 = vpop.f32.mrb[0].mxu0
        %v805 = vpop.f32.mrb[0].mxu0
        %v806 = vpop.f32.mrb[0].mxu0
        %807 = vdwg.mxu0
        %808 = vrot.lane.b32.xlu0 %v466, 96
        %v809 = vpop.permute.xlu0 %808
        %v811 = vsel %vm473, %v466, 0
        %v814 = vsel %vm473, %v809, 0
        %816 = vmatprep.subr.bf16.mxu0 0
        %817 = vmatpush1.bf16.xpose.msra.mxu0 %v814
        %818 = vmatprep.subr.bf16.mxu0 0
        %819 = vmatpush1.bf16.xpose.msra.mxu0 0
        %820 = vmatprep.subr.bf16.mxu0 0
        %821 = vmatpush1.bf16.xpose.msra.mxu0 0
        %822 = vmatprep.subr.bf16.mxu0 0
        %823 = vmatpush1.bf16.xpose.msra.mxu0 0
        %824 = vmatprep.subr.bf16.mxu0 0
        %825 = vmatpush1.bf16.xpose.msra.mxu0 0
        %826 = vmatprep.subr.bf16.mxu0 0
        %827 = vmatpush1.bf16.xpose.msra.mxu0 0
        %828 = vmatprep.subr.bf16.mxu0 0
        %829 = vmatpush1.bf16.xpose.msra.mxu0 0
        %830 = vmatprep.subr.bf16.mxu0 0
        %831 = vmatpush1.bf16.xpose.msra.mxu0 0
        %832 = vmatprep.subr.bf16.mxu0 0
        %833 = vmatpush1.bf16.xpose.msra.mxu0 0
        %834 = vmatprep.subr.bf16.mxu0 0
        %835 = vmatpush1.bf16.xpose.msra.mxu0 0
        %836 = vmatprep.subr.bf16.mxu0 0
        %837 = vmatpush1.bf16.xpose.msra.mxu0 0
        %838 = vmatprep.subr.bf16.mxu0 0
        %839 = vmatpush1.bf16.xpose.msra.mxu0 0
        %840 = vmatprep.subr.bf16.mxu0 0
        %841 = vmatpush1.bf16.xpose.msra.mxu0 0
        %842 = vmatprep.subr.bf16.mxu0 0
        %843 = vmatpush1.bf16.xpose.msra.mxu0 0
        %844 = vmatprep.subr.bf16.mxu0 0
        %845 = vmatpush1.bf16.xpose.msra.mxu0 0
        %846 = vmatprep.subr.bf16.mxu0 0
        %847 = vmatpush1.bf16.xpose.msra.mxu0 0
        %848 = vmatprep.mubr.bf16.mxu0 0
        %849 = vmatmul.mubr.bf16.gmra.mrb[0].mxu0 %v811
        %v850 = vpop.f32.mrb[0].mxu0
        %v851 = vadd.f32 0.0, %v850
        %v852 = vpop.f32.mrb[0].mxu0
        %v853 = vpop.f32.mrb[0].mxu0
        %v854 = vpop.f32.mrb[0].mxu0
        %855 = vdwg.mxu0
        %856 = vrot.lane.b32.xlu0 %v441, 96
        %v857 = vpop.permute.xlu0 %856
        %v859 = vsel %vm473, %v441, 0
        %v862 = vsel %vm473, %v857, 0
        %864 = vmatprep.subr.bf16.mxu0 0
        %865 = vmatpush1.bf16.xpose.msra.mxu0 %v862
        %866 = vmatprep.subr.bf16.mxu0 0
        %867 = vmatpush1.bf16.xpose.msra.mxu0 0
        %868 = vmatprep.subr.bf16.mxu0 0
        %869 = vmatpush1.bf16.xpose.msra.mxu0 0
        %870 = vmatprep.subr.bf16.mxu0 0
        %871 = vmatpush1.bf16.xpose.msra.mxu0 0
        %872 = vmatprep.subr.bf16.mxu0 0
        %873 = vmatpush1.bf16.xpose.msra.mxu0 0
        %874 = vmatprep.subr.bf16.mxu0 0
        %875 = vmatpush1.bf16.xpose.msra.mxu0 0
        %876 = vmatprep.subr.bf16.mxu0 0
        %877 = vmatpush1.bf16.xpose.msra.mxu0 0
        %878 = vmatprep.subr.bf16.mxu0 0
        %879 = vmatpush1.bf16.xpose.msra.mxu0 0
        %880 = vmatprep.subr.bf16.mxu0 0
        %881 = vmatpush1.bf16.xpose.msra.mxu0 0
        %882 = vmatprep.subr.bf16.mxu0 0
        %883 = vmatpush1.bf16.xpose.msra.mxu0 0
        %884 = vmatprep.subr.bf16.mxu0 0
        %885 = vmatpush1.bf16.xpose.msra.mxu0 0
        %886 = vmatprep.subr.bf16.mxu0 0
        %887 = vmatpush1.bf16.xpose.msra.mxu0 0
        %888 = vmatprep.subr.bf16.mxu0 0
        %889 = vmatpush1.bf16.xpose.msra.mxu0 0
        %890 = vmatprep.subr.bf16.mxu0 0
        %891 = vmatpush1.bf16.xpose.msra.mxu0 0
        %892 = vmatprep.subr.bf16.mxu0 0
        %893 = vmatpush1.bf16.xpose.msra.mxu0 0
        %894 = vmatprep.subr.bf16.mxu0 0
        %895 = vmatpush1.bf16.xpose.msra.mxu0 0
        %896 = vmatprep.mubr.bf16.mxu0 0
        %897 = vmatmul.mubr.bf16.gmra.mrb[0].mxu0 %v859
        %v898 = vpop.f32.mrb[0].mxu0
        %v899 = vadd.f32 0.0, %v898
        %v900 = vpop.f32.mrb[0].mxu0
        %v901 = vpop.f32.mrb[0].mxu0
        %v902 = vpop.f32.mrb[0].mxu0
        %903 = vdwg.mxu0
        %904 = vrot.lane.b32.xlu0 %v452, 96
        %v905 = vpop.permute.xlu0 %904
        %v907 = vsel %vm473, %v452, 0
        %v910 = vsel %vm473, %v905, 0
        %912 = vmatprep.subr.bf16.mxu0 0
        %913 = vmatpush1.bf16.xpose.msra.mxu0 %v910
        %914 = vmatprep.subr.bf16.mxu0 0
        %915 = vmatpush1.bf16.xpose.msra.mxu0 0
        %916 = vmatprep.subr.bf16.mxu0 0
        %917 = vmatpush1.bf16.xpose.msra.mxu0 0
        %918 = vmatprep.subr.bf16.mxu0 0
        %919 = vmatpush1.bf16.xpose.msra.mxu0 0
        %920 = vmatprep.subr.bf16.mxu0 0
        %921 = vmatpush1.bf16.xpose.msra.mxu0 0
        %922 = vmatprep.subr.bf16.mxu0 0
        %923 = vmatpush1.bf16.xpose.msra.mxu0 0
        %924 = vmatprep.subr.bf16.mxu0 0
        %925 = vmatpush1.bf16.xpose.msra.mxu0 0
        %926 = vmatprep.subr.bf16.mxu0 0
        %927 = vmatpush1.bf16.xpose.msra.mxu0 0
        %928 = vmatprep.subr.bf16.mxu0 0
        %929 = vmatpush1.bf16.xpose.msra.mxu0 0
        %930 = vmatprep.subr.bf16.mxu0 0
        %931 = vmatpush1.bf16.xpose.msra.mxu0 0
        %932 = vmatprep.subr.bf16.mxu0 0
        %933 = vmatpush1.bf16.xpose.msra.mxu0 0
        %934 = vmatprep.subr.bf16.mxu0 0
        %935 = vmatpush1.bf16.xpose.msra.mxu0 0
        %936 = vmatprep.subr.bf16.mxu0 0
        %937 = vmatpush1.bf16.xpose.msra.mxu0 0
        %938 = vmatprep.subr.bf16.mxu0 0
        %939 = vmatpush1.bf16.xpose.msra.mxu0 0
        %940 = vmatprep.subr.bf16.mxu0 0
        %941 = vmatpush1.bf16.xpose.msra.mxu0 0
        %942 = vmatprep.subr.bf16.mxu0 0
        %943 = vmatpush1.bf16.xpose.msra.mxu0 0
        %944 = vmatprep.mubr.bf16.mxu0 0
        %945 = vmatmul.mubr.bf16.gmra.mrb[0].mxu0 %v907
        %v946 = vpop.f32.mrb[0].mxu0
        %v947 = vadd.f32 0.0, %v946
        %v948 = vpop.f32.mrb[0].mxu0
        %v949 = vpop.f32.mrb[0].mxu0
        %v950 = vpop.f32.mrb[0].mxu0
        %951 = vdwg.mxu0
        %952 = vrot.lane.b32.xlu0 %v460, 96
        %v953 = vpop.permute.xlu0 %952
        %v955 = vsel %vm473, %v460, 0
        %v958 = vsel %vm473, %v953, 0
        %960 = vmatprep.subr.bf16.mxu0 0
        %961 = vmatpush1.bf16.xpose.msra.mxu0 %v958
        %962 = vmatprep.subr.bf16.mxu0 0
        %963 = vmatpush1.bf16.xpose.msra.mxu0 0
        %964 = vmatprep.subr.bf16.mxu0 0
        %965 = vmatpush1.bf16.xpose.msra.mxu0 0
        %966 = vmatprep.subr.bf16.mxu0 0
        %967 = vmatpush1.bf16.xpose.msra.mxu0 0
        %968 = vmatprep.subr.bf16.mxu0 0
        %969 = vmatpush1.bf16.xpose.msra.mxu0 0
        %970 = vmatprep.subr.bf16.mxu0 0
        %971 = vmatpush1.bf16.xpose.msra.mxu0 0
        %972 = vmatprep.subr.bf16.mxu0 0
        %973 = vmatpush1.bf16.xpose.msra.mxu0 0
        %974 = vmatprep.subr.bf16.mxu0 0
        %975 = vmatpush1.bf16.xpose.msra.mxu0 0
        %976 = vmatprep.subr.bf16.mxu0 0
        %977 = vmatpush1.bf16.xpose.msra.mxu0 0
        %978 = vmatprep.subr.bf16.mxu0 0
        %979 = vmatpush1.bf16.xpose.msra.mxu0 0
        %980 = vmatprep.subr.bf16.mxu0 0
        %981 = vmatpush1.bf16.xpose.msra.mxu0 0
        %982 = vmatprep.subr.bf16.mxu0 0
        %983 = vmatpush1.bf16.xpose.msra.mxu0 0
        %984 = vmatprep.subr.bf16.mxu0 0
        %985 = vmatpush1.bf16.xpose.msra.mxu0 0
        %986 = vmatprep.subr.bf16.mxu0 0
        %987 = vmatpush1.bf16.xpose.msra.mxu0 0
        %988 = vmatprep.subr.bf16.mxu0 0
        %989 = vmatpush1.bf16.xpose.msra.mxu0 0
        %990 = vmatprep.subr.bf16.mxu0 0
        %991 = vmatpush1.bf16.xpose.msra.mxu0 0
        %992 = vmatprep.mubr.bf16.mxu0 0
        %993 = vmatmul.mubr.bf16.gmra.mrb[0].mxu0 %v955
        %v994 = vpop.f32.mrb[0].mxu0
        %v995 = vadd.f32 0.0, %v994
        %v996 = vpop.f32.mrb[0].mxu0
        %v997 = vpop.f32.mrb[0].mxu0
        %v998 = vpop.f32.mrb[0].mxu0
        %999 = vdwg.mxu0
        %1000 = vrot.lane.b32.xlu0 %v468, 96
        %v1001 = vpop.permute.xlu0 %1000
        %v1003 = vsel %vm473, %v468, 0
        %v1006 = vsel %vm473, %v1001, 0
        %1008 = vmatprep.subr.bf16.mxu0 0
        %1009 = vmatpush1.bf16.xpose.msra.mxu0 %v1006
        %1010 = vmatprep.subr.bf16.mxu0 0
        %1011 = vmatpush1.bf16.xpose.msra.mxu0 0
        %1012 = vmatprep.subr.bf16.mxu0 0
        %1013 = vmatpush1.bf16.xpose.msra.mxu0 0
        %1014 = vmatprep.subr.bf16.mxu0 0
        %1015 = vmatpush1.bf16.xpose.msra.mxu0 0
        %1016 = vmatprep.subr.bf16.mxu0 0
        %1017 = vmatpush1.bf16.xpose.msra.mxu0 0
        %1018 = vmatprep.subr.bf16.mxu0 0
        %1019 = vmatpush1.bf16.xpose.msra.mxu0 0
        %1020 = vmatprep.subr.bf16.mxu0 0
        %1021 = vmatpush1.bf16.xpose.msra.mxu0 0
        %1022 = vmatprep.subr.bf16.mxu0 0
        %1023 = vmatpush1.bf16.xpose.msra.mxu0 0
        %1024 = vmatprep.subr.bf16.mxu0 0
        %1025 = vmatpush1.bf16.xpose.msra.mxu0 0
        %1026 = vmatprep.subr.bf16.mxu0 0
        %1027 = vmatpush1.bf16.xpose.msra.mxu0 0
        %1028 = vmatprep.subr.bf16.mxu0 0
        %1029 = vmatpush1.bf16.xpose.msra.mxu0 0
        %1030 = vmatprep.subr.bf16.mxu0 0
        %1031 = vmatpush1.bf16.xpose.msra.mxu0 0
        %1032 = vmatprep.subr.bf16.mxu0 0
        %1033 = vmatpush1.bf16.xpose.msra.mxu0 0
        %1034 = vmatprep.subr.bf16.mxu0 0
        %1035 = vmatpush1.bf16.xpose.msra.mxu0 0
        %1036 = vmatprep.subr.bf16.mxu0 0
        %1037 = vmatpush1.bf16.xpose.msra.mxu0 0
        %1038 = vmatprep.subr.bf16.mxu0 0
        %1039 = vmatpush1.bf16.xpose.msra.mxu0 0
        %1040 = vmatprep.mubr.bf16.mxu0 0
        %1041 = vmatmul.mubr.bf16.gmra.mrb[0].mxu0 %v1003
        %v1042 = vpop.f32.mrb[0].mxu0
        %v1043 = vadd.f32 0.0, %v1042
        %v1044 = vpop.f32.mrb[0].mxu0
        %v1045 = vpop.f32.mrb[0].mxu0
        %v1046 = vpop.f32.mrb[0].mxu0
        %1047 = vdwg.mxu0
        %1048 = vrot.lane.b32.xlu0 %v442, 96
        %v1049 = vpop.permute.xlu0 %1048
        %v1051 = vsel %vm473, %v442, 0
        %v1054 = vsel %vm473, %v1049, 0
        %1056 = vmatprep.subr.bf16.mxu0 0
        %1057 = vmatpush1.bf16.xpose.msra.mxu0 %v1054
        %1058 = vmatprep.subr.bf16.mxu0 0
        %1059 = vmatpush1.bf16.xpose.msra.mxu0 0
        %1060 = vmatprep.subr.bf16.mxu0 0
        %1061 = vmatpush1.bf16.xpose.msra.mxu0 0
        %1062 = vmatprep.subr.bf16.mxu0 0
        %1063 = vmatpush1.bf16.xpose.msra.mxu0 0
        %1064 = vmatprep.subr.bf16.mxu0 0
        %1065 = vmatpush1.bf16.xpose.msra.mxu0 0
        %1066 = vmatprep.subr.bf16.mxu0 0
        %1067 = vmatpush1.bf16.xpose.msra.mxu0 0
        %1068 = vmatprep.subr.bf16.mxu0 0
        %1069 = vmatpush1.bf16.xpose.msra.mxu0 0
        %1070 = vmatprep.subr.bf16.mxu0 0
        %1071 = vmatpush1.bf16.xpose.msra.mxu0 0
        %1072 = vmatprep.subr.bf16.mxu0 0
        %1073 = vmatpush1.bf16.xpose.msra.mxu0 0
        %1074 = vmatprep.subr.bf16.mxu0 0
        %1075 = vmatpush1.bf16.xpose.msra.mxu0 0
        %1076 = vmatprep.subr.bf16.mxu0 0
        %1077 = vmatpush1.bf16.xpose.msra.mxu0 0
        %1078 = vmatprep.subr.bf16.mxu0 0
        %1079 = vmatpush1.bf16.xpose.msra.mxu0 0
        %1080 = vmatprep.subr.bf16.mxu0 0
        %1081 = vmatpush1.bf16.xpose.msra.mxu0 0
        %1082 = vmatprep.subr.bf16.mxu0 0
        %1083 = vmatpush1.bf16.xpose.msra.mxu0 0
        %1084 = vmatprep.subr.bf16.mxu0 0
        %1085 = vmatpush1.bf16.xpose.msra.mxu0 0
        %1086 = vmatprep.subr.bf16.mxu0 0
        %1087 = vmatpush1.bf16.xpose.msra.mxu0 0
        %1088 = vmatprep.mubr.bf16.mxu0 0
        %1089 = vmatmul.mubr.bf16.gmra.mrb[0].mxu0 %v1051
        %v1090 = vpop.f32.mrb[0].mxu0
        %v1091 = vadd.f32 0.0, %v1090
        %v1092 = vpop.f32.mrb[0].mxu0
        %v1093 = vpop.f32.mrb[0].mxu0
        %v1094 = vpop.f32.mrb[0].mxu0
        %1095 = vdwg.mxu0
        %1096 = vrot.lane.b32.xlu0 %v454, 96
        %v1097 = vpop.permute.xlu0 %1096
        %v1099 = vsel %vm473, %v454, 0
        %v1102 = vsel %vm473, %v1097, 0
        %1104 = vmatprep.subr.bf16.mxu0 0
        %1105 = vmatpush1.bf16.xpose.msra.mxu0 %v1102
        %1106 = vmatprep.subr.bf16.mxu0 0
        %1107 = vmatpush1.bf16.xpose.msra.mxu0 0
        %1108 = vmatprep.subr.bf16.mxu0 0
        %1109 = vmatpush1.bf16.xpose.msra.mxu0 0
        %1110 = vmatprep.subr.bf16.mxu0 0
        %1111 = vmatpush1.bf16.xpose.msra.mxu0 0
        %1112 = vmatprep.subr.bf16.mxu0 0
        %1113 = vmatpush1.bf16.xpose.msra.mxu0 0
        %1114 = vmatprep.subr.bf16.mxu0 0
        %1115 = vmatpush1.bf16.xpose.msra.mxu0 0
        %1116 = vmatprep.subr.bf16.mxu0 0
        %1117 = vmatpush1.bf16.xpose.msra.mxu0 0
        %1118 = vmatprep.subr.bf16.mxu0 0
        %1119 = vmatpush1.bf16.xpose.msra.mxu0 0
        %1120 = vmatprep.subr.bf16.mxu0 0
        %1121 = vmatpush1.bf16.xpose.msra.mxu0 0
        %1122 = vmatprep.subr.bf16.mxu0 0
        %1123 = vmatpush1.bf16.xpose.msra.mxu0 0
        %1124 = vmatprep.subr.bf16.mxu0 0
        %1125 = vmatpush1.bf16.xpose.msra.mxu0 0
        %1126 = vmatprep.subr.bf16.mxu0 0
        %1127 = vmatpush1.bf16.xpose.msra.mxu0 0
        %1128 = vmatprep.subr.bf16.mxu0 0
        %1129 = vmatpush1.bf16.xpose.msra.mxu0 0
        %1130 = vmatprep.subr.bf16.mxu0 0
        %1131 = vmatpush1.bf16.xpose.msra.mxu0 0
        %1132 = vmatprep.subr.bf16.mxu0 0
        %1133 = vmatpush1.bf16.xpose.msra.mxu0 0
        %1134 = vmatprep.subr.bf16.mxu0 0
        %1135 = vmatpush1.bf16.xpose.msra.mxu0 0
        %1136 = vmatprep.mubr.bf16.mxu0 0
        %1137 = vmatmul.mubr.bf16.gmra.mrb[0].mxu0 %v1099
        %v1138 = vpop.f32.mrb[0].mxu0
        %v1139 = vadd.f32 0.0, %v1138
        %v1140 = vpop.f32.mrb[0].mxu0
        %v1141 = vpop.f32.mrb[0].mxu0
        %v1142 = vpop.f32.mrb[0].mxu0
        %1143 = vdwg.mxu0
        %1144 = vrot.lane.b32.xlu0 %v462, 96
        %v1145 = vpop.permute.xlu0 %1144
        %v1147 = vsel %vm473, %v462, 0
        %v1150 = vsel %vm473, %v1145, 0
        %1152 = vmatprep.subr.bf16.mxu0 0
        %1153 = vmatpush1.bf16.xpose.msra.mxu0 %v1150
        %1154 = vmatprep.subr.bf16.mxu0 0
        %1155 = vmatpush1.bf16.xpose.msra.mxu0 0
        %1156 = vmatprep.subr.bf16.mxu0 0
        %1157 = vmatpush1.bf16.xpose.msra.mxu0 0
        %1158 = vmatprep.subr.bf16.mxu0 0
        %1159 = vmatpush1.bf16.xpose.msra.mxu0 0
        %1160 = vmatprep.subr.bf16.mxu0 0
        %1161 = vmatpush1.bf16.xpose.msra.mxu0 0
        %1162 = vmatprep.subr.bf16.mxu0 0
        %1163 = vmatpush1.bf16.xpose.msra.mxu0 0
        %1164 = vmatprep.subr.bf16.mxu0 0
        %1165 = vmatpush1.bf16.xpose.msra.mxu0 0
        %1166 = vmatprep.subr.bf16.mxu0 0
        %1167 = vmatpush1.bf16.xpose.msra.mxu0 0
        %1168 = vmatprep.subr.bf16.mxu0 0
        %1169 = vmatpush1.bf16.xpose.msra.mxu0 0
        %1170 = vmatprep.subr.bf16.mxu0 0
        %1171 = vmatpush1.bf16.xpose.msra.mxu0 0
        %1172 = vmatprep.subr.bf16.mxu0 0
        %1173 = vmatpush1.bf16.xpose.msra.mxu0 0
        %1174 = vmatprep.subr.bf16.mxu0 0
        %1175 = vmatpush1.bf16.xpose.msra.mxu0 0
        %1176 = vmatprep.subr.bf16.mxu0 0
        %1177 = vmatpush1.bf16.xpose.msra.mxu0 0
        %1178 = vmatprep.subr.bf16.mxu0 0
        %1179 = vmatpush1.bf16.xpose.msra.mxu0 0
        %1180 = vmatprep.subr.bf16.mxu0 0
        %1181 = vmatpush1.bf16.xpose.msra.mxu0 0
        %1182 = vmatprep.subr.bf16.mxu0 0
        %1183 = vmatpush1.bf16.xpose.msra.mxu0 0
        %1184 = vmatprep.mubr.bf16.mxu0 0
        %1185 = vmatmul.mubr.bf16.gmra.mrb[0].mxu0 %v1147
        %v1186 = vpop.f32.mrb[0].mxu0
        %v1187 = vadd.f32 0.0, %v1186
        %v1188 = vpop.f32.mrb[0].mxu0
        %v1189 = vpop.f32.mrb[0].mxu0
        %v1190 = vpop.f32.mrb[0].mxu0
        %1191 = vdwg.mxu0
        %1192 = vrot.lane.b32.xlu0 %v470, 96
        %v1193 = vpop.permute.xlu0 %1192
        %v1195 = vsel %vm473, %v470, 0
        %v1198 = vsel %vm473, %v1193, 0
        %1200 = vmatprep.subr.bf16.mxu0 0
        %1201 = vmatpush1.bf16.xpose.msra.mxu0 %v1198
        %1202 = vmatprep.subr.bf16.mxu0 0
        %1203 = vmatpush1.bf16.xpose.msra.mxu0 0
        %1204 = vmatprep.subr.bf16.mxu0 0
        %1205 = vmatpush1.bf16.xpose.msra.mxu0 0
        %1206 = vmatprep.subr.bf16.mxu0 0
        %1207 = vmatpush1.bf16.xpose.msra.mxu0 0
        %1208 = vmatprep.subr.bf16.mxu0 0
        %1209 = vmatpush1.bf16.xpose.msra.mxu0 0
        %1210 = vmatprep.subr.bf16.mxu0 0
        %1211 = vmatpush1.bf16.xpose.msra.mxu0 0
        %1212 = vmatprep.subr.bf16.mxu0 0
        %1213 = vmatpush1.bf16.xpose.msra.mxu0 0
        %1214 = vmatprep.subr.bf16.mxu0 0
        %1215 = vmatpush1.bf16.xpose.msra.mxu0 0
        %1216 = vmatprep.subr.bf16.mxu0 0
        %1217 = vmatpush1.bf16.xpose.msra.mxu0 0
        %1218 = vmatprep.subr.bf16.mxu0 0
        %1219 = vmatpush1.bf16.xpose.msra.mxu0 0
        %1220 = vmatprep.subr.bf16.mxu0 0
        %1221 = vmatpush1.bf16.xpose.msra.mxu0 0
        %1222 = vmatprep.subr.bf16.mxu0 0
        %1223 = vmatpush1.bf16.xpose.msra.mxu0 0
        %1224 = vmatprep.subr.bf16.mxu0 0
        %1225 = vmatpush1.bf16.xpose.msra.mxu0 0
        %1226 = vmatprep.subr.bf16.mxu0 0
        %1227 = vmatpush1.bf16.xpose.msra.mxu0 0
        %1228 = vmatprep.subr.bf16.mxu0 0
        %1229 = vmatpush1.bf16.xpose.msra.mxu0 0
        %1230 = vmatprep.subr.bf16.mxu0 0
        %1231 = vmatpush1.bf16.xpose.msra.mxu0 0
        %1232 = vmatprep.mubr.bf16.mxu0 0
        %1233 = vmatmul.mubr.bf16.gmra.mrb[0].mxu0 %v1195
        %v1234 = vpop.f32.mrb[0].mxu0
        %v1235 = vadd.f32 0.0, %v1234
        %v1236 = vpop.f32.mrb[0].mxu0
        %v1237 = vpop.f32.mrb[0].mxu0
        %v1238 = vpop.f32.mrb[0].mxu0
        %1239 = vdwg.mxu0
        %v1240 = vsel %vm473, %v515, -inf
        %1241 = vmax.xlane.f32.xlu0 %v1240
        %v1242 = vpop.xlane.xlu0 %1241
        %v1243 = vsel %vm473, %v563, -inf
        %1244 = vmax.xlane.f32.xlu0 %v1243
        %v1245 = vpop.xlane.xlu0 %1244
        %v1246 = vsel %vm473, %v611, -inf
        %1247 = vmax.xlane.f32.xlu0 %v1246
        %v1248 = vpop.xlane.xlu0 %1247
        %v1249 = vsel %vm473, %v659, -inf
        %1250 = vmax.xlane.f32.xlu0 %v1249
        %v1251 = vpop.xlane.xlu0 %1250
        %v1252 = vsel %vm473, %v707, -inf
        %1253 = vmax.xlane.f32.xlu0 %v1252
        %v1254 = vpop.xlane.xlu0 %1253
        %v1255 = vsel %vm473, %v755, -inf
        %1256 = vmax.xlane.f32.xlu0 %v1255
        %v1257 = vpop.xlane.xlu0 %1256
        %v1258 = vsel %vm473, %v803, -inf
        %1259 = vmax.xlane.f32.xlu0 %v1258
        %v1260 = vpop.xlane.xlu0 %1259
        %v1261 = vsel %vm473, %v851, -inf
        %1262 = vmax.xlane.f32.xlu0 %v1261
        %v1263 = vpop.xlane.xlu0 %1262
        %v1264 = vsel %vm473, %v899, -inf
        %1265 = vmax.xlane.f32.xlu0 %v1264
        %v1266 = vpop.xlane.xlu0 %1265
        %v1267 = vsel %vm473, %v947, -inf
        %1268 = vmax.xlane.f32.xlu0 %v1267
        %v1269 = vpop.xlane.xlu0 %1268
        %v1270 = vsel %vm473, %v995, -inf
        %1271 = vmax.xlane.f32.xlu0 %v1270
        %v1272 = vpop.xlane.xlu0 %1271
        %v1273 = vsel %vm473, %v1043, -inf
        %1274 = vmax.xlane.f32.xlu0 %v1273
        %v1275 = vpop.xlane.xlu0 %1274
        %v1276 = vsel %vm473, %v1091, -inf
        %1277 = vmax.xlane.f32.xlu0 %v1276
        %v1278 = vpop.xlane.xlu0 %1277
        %v1279 = vsel %vm473, %v1139, -inf
        %1280 = vmax.xlane.f32.xlu0 %v1279
        %v1281 = vpop.xlane.xlu0 %1280
        %v1282 = vsel %vm473, %v1187, -inf
        %1283 = vmax.xlane.f32.xlu0 %v1282
        %v1284 = vpop.xlane.xlu0 %1283
        %v1285 = vsel %vm473, %v1235, -inf
        %1286 = vmax.xlane.f32.xlu0 %v1285
        %v1287 = vpop.xlane.xlu0 %1286
        %v1288 = vsub.f32 %v515, %v1242
        %v1289 = vsub.f32 %v563, %v1245
        %v1290 = vsub.f32 %v611, %v1248
        %v1291 = vsub.f32 %v659, %v1251
        %v1292 = vsub.f32 %v707, %v1254
        %v1293 = vsub.f32 %v755, %v1257
        %v1294 = vsub.f32 %v803, %v1260
        %v1295 = vsub.f32 %v851, %v1263
        %v1296 = vsub.f32 %v899, %v1266
        %v1297 = vsub.f32 %v947, %v1269
        %v1298 = vsub.f32 %v995, %v1272
        %v1299 = vsub.f32 %v1043, %v1275
        %v1300 = vsub.f32 %v1091, %v1278
        %v1301 = vsub.f32 %v1139, %v1281
        %v1302 = vsub.f32 %v1187, %v1284
        %v1303 = vsub.f32 %v1235, %v1287
        %v1304 = vmul.f32 %v1288, 1.442695
        %v1305 = vpow.pop %v1304
        %v1306 = vmul.f32 %v1289, 1.442695
        %v1307 = vpow.pop %v1306
        %v1308 = vmul.f32 %v1290, 1.442695
        %v1309 = vpow.pop %v1308
        %v1310 = vmul.f32 %v1291, 1.442695
        %v1311 = vpow.pop %v1310
        %v1312 = vmul.f32 %v1292, 1.442695
        %v1313 = vpow.pop %v1312
        %v1314 = vmul.f32 %v1293, 1.442695
        %v1315 = vpow.pop %v1314
        %v1316 = vmul.f32 %v1294, 1.442695
        %v1317 = vpow.pop %v1316
        %v1318 = vmul.f32 %v1295, 1.442695
        %v1319 = vpow.pop %v1318
        %v1320 = vmul.f32 %v1296, 1.442695
        %v1321 = vpow.pop %v1320
        %v1322 = vmul.f32 %v1297, 1.442695
        %v1323 = vpow.pop %v1322
        %v1324 = vmul.f32 %v1298, 1.442695
        %v1325 = vpow.pop %v1324
        %v1326 = vmul.f32 %v1299, 1.442695
        %v1327 = vpow.pop %v1326
        %v1328 = vmul.f32 %v1300, 1.442695
        %v1329 = vpow.pop %v1328
        %v1330 = vmul.f32 %v1301, 1.442695
        %v1331 = vpow.pop %v1330
        %v1332 = vmul.f32 %v1302, 1.442695
        %v1333 = vpow.pop %v1332
        %v1334 = vmul.f32 %v1303, 1.442695
        %v1335 = vpow.pop %v1334
        %v1336 = vsel %vm473, %v1305, 0.0
        %1337 = vadd.xlane.f32.xlu0 %v1336
        %v1338 = vpop.xlane.xlu0 %1337
        %v1339 = vsel %vm473, %v1307, 0.0
        %1340 = vadd.xlane.f32.xlu0 %v1339
        %v1341 = vpop.xlane.xlu0 %1340
        %v1342 = vsel %vm473, %v1309, 0.0
        %1343 = vadd.xlane.f32.xlu0 %v1342
        %v1344 = vpop.xlane.xlu0 %1343
        %v1345 = vsel %vm473, %v1311, 0.0
        %1346 = vadd.xlane.f32.xlu0 %v1345
        %v1347 = vpop.xlane.xlu0 %1346
        %v1348 = vsel %vm473, %v1313, 0.0
        %1349 = vadd.xlane.f32.xlu0 %v1348
        %v1350 = vpop.xlane.xlu0 %1349
        %v1351 = vsel %vm473, %v1315, 0.0
        %1352 = vadd.xlane.f32.xlu0 %v1351
        %v1353 = vpop.xlane.xlu0 %1352
        %v1354 = vsel %vm473, %v1317, 0.0
        %1355 = vadd.xlane.f32.xlu0 %v1354
        %v1356 = vpop.xlane.xlu0 %1355
        %v1357 = vsel %vm473, %v1319, 0.0
        %1358 = vadd.xlane.f32.xlu0 %v1357
        %v1359 = vpop.xlane.xlu0 %1358
        %v1360 = vsel %vm473, %v1321, 0.0
        %1361 = vadd.xlane.f32.xlu0 %v1360
        %v1362 = vpop.xlane.xlu0 %1361
        %v1363 = vsel %vm473, %v1323, 0.0
        %1364 = vadd.xlane.f32.xlu0 %v1363
        %v1365 = vpop.xlane.xlu0 %1364
        %v1366 = vsel %vm473, %v1325, 0.0
        %1367 = vadd.xlane.f32.xlu0 %v1366
        %v1368 = vpop.xlane.xlu0 %1367
        %v1369 = vsel %vm473, %v1327, 0.0
        %1370 = vadd.xlane.f32.xlu0 %v1369
        %v1371 = vpop.xlane.xlu0 %1370
        %v1372 = vsel %vm473, %v1329, 0.0
        %1373 = vadd.xlane.f32.xlu0 %v1372
        %v1374 = vpop.xlane.xlu0 %1373
        %v1375 = vsel %vm473, %v1331, 0.0
        %1376 = vadd.xlane.f32.xlu0 %v1375
        %v1377 = vpop.xlane.xlu0 %1376
        %v1378 = vsel %vm473, %v1333, 0.0
        %1379 = vadd.xlane.f32.xlu0 %v1378
        %v1380 = vpop.xlane.xlu0 %1379
        %v1381 = vsel %vm473, %v1335, 0.0
        %1382 = vadd.xlane.f32.xlu0 %v1381
        %v1383 = vpop.xlane.xlu0 %1382
        %v1384 = vrcp.pop %v1338
        %v1385 = vrcp.pop %v1341
        %v1386 = vrcp.pop %v1344
        %v1387 = vrcp.pop %v1347
        %v1388 = vrcp.pop %v1350
        %v1389 = vrcp.pop %v1353
        %v1390 = vrcp.pop %v1356
        %v1391 = vrcp.pop %v1359
        %v1392 = vrcp.pop %v1362
        %v1393 = vrcp.pop %v1365
        %v1394 = vrcp.pop %v1368
        %v1395 = vrcp.pop %v1371
        %v1396 = vrcp.pop %v1374
        %v1397 = vrcp.pop %v1377
        %v1398 = vrcp.pop %v1380
        %v1399 = vrcp.pop %v1383
        %v1400 = vmul.f32 %v1305, %v1384
        %v1401 = vmul.f32 %v1307, %v1385
        %v1402 = vmul.f32 %v1309, %v1386
        %v1403 = vmul.f32 %v1311, %v1387
        %v1404 = vmul.f32 %v1313, %v1388
        %v1405 = vmul.f32 %v1315, %v1389
        %v1406 = vmul.f32 %v1317, %v1390
        %v1407 = vmul.f32 %v1319, %v1391
        %v1408 = vmul.f32 %v1321, %v1392
        %v1409 = vmul.f32 %v1323, %v1393
        %v1410 = vmul.f32 %v1325, %v1394
        %v1411 = vmul.f32 %v1327, %v1395
        %v1412 = vmul.f32 %v1329, %v1396
        %v1413 = vmul.f32 %v1331, %v1397
        %v1414 = vmul.f32 %v1333, %v1398
        %v1415 = vmul.f32 %v1335, %v1399
        %v1416 = vpack.c.bf16 %v1400, %v1400
        %v1417 = vpack.c.bf16 %v1401, %v1401
        %v1418 = vpack.c.bf16 %v1402, %v1402
        %v1419 = vpack.c.bf16 %v1403, %v1403
        %v1420 = vpack.c.bf16 %v1404, %v1404
        %v1421 = vpack.c.bf16 %v1405, %v1405
        %v1422 = vpack.c.bf16 %v1406, %v1406
        %v1423 = vpack.c.bf16 %v1407, %v1407
        %v1424 = vpack.c.bf16 %v1408, %v1408
        %v1425 = vpack.c.bf16 %v1409, %v1409
        %v1426 = vpack.c.bf16 %v1410, %v1410
        %v1427 = vpack.c.bf16 %v1411, %v1411
        %v1428 = vpack.c.bf16 %v1412, %v1412
        %v1429 = vpack.c.bf16 %v1413, %v1413
        %v1430 = vpack.c.bf16 %v1414, %v1414
        %v1431 = vpack.c.bf16 %v1415, %v1415
        %1432 = vrot.lane.b32.xlu0 %v439, 64
        %v1433 = vpop.permute.xlu0 %1432
        %v1435 = vsel %vm473, %v1416, 0
        %vm1437 = vcmask 1043456
        %v1439 = vsel %vm1437, %v1433, 0
        %1441 = vmatprep.subr.bf16.mxu0 0
        %1442 = vmatpush1.bf16.msra.mxu0 %v1439
        %1443 = vmatprep.subr.bf16.mxu0 0
        %1444 = vmatpush1.bf16.msra.mxu0 0
        %1445 = vmatprep.subr.bf16.mxu0 0
        %1446 = vmatpush1.bf16.msra.mxu0 0
        %1447 = vmatprep.subr.bf16.mxu0 0
        %1448 = vmatpush1.bf16.msra.mxu0 0
        %1449 = vmatprep.subr.bf16.mxu0 0
        %1450 = vmatpush1.bf16.msra.mxu0 0
        %1451 = vmatprep.subr.bf16.mxu0 0
        %1452 = vmatpush1.bf16.msra.mxu0 0
        %1453 = vmatprep.subr.bf16.mxu0 0
        %1454 = vmatpush1.bf16.msra.mxu0 0
        %1455 = vmatprep.subr.bf16.mxu0 0
        %1456 = vmatpush1.bf16.msra.mxu0 0
        %1457 = vmatprep.subr.bf16.mxu0 0
        %1458 = vmatpush1.bf16.msra.mxu0 0
        %1459 = vmatprep.subr.bf16.mxu0 0
        %1460 = vmatpush1.bf16.msra.mxu0 0
        %1461 = vmatprep.subr.bf16.mxu0 0
        %1462 = vmatpush1.bf16.msra.mxu0 0
        %1463 = vmatprep.subr.bf16.mxu0 0
        %1464 = vmatpush1.bf16.msra.mxu0 0
        %1465 = vmatprep.subr.bf16.mxu0 0
        %1466 = vmatpush1.bf16.msra.mxu0 0
        %1467 = vmatprep.subr.bf16.mxu0 0
        %1468 = vmatpush1.bf16.msra.mxu0 0
        %1469 = vmatprep.subr.bf16.mxu0 0
        %1470 = vmatpush1.bf16.msra.mxu0 0
        %1471 = vmatprep.subr.bf16.mxu0 0
        %1472 = vmatpush1.bf16.msra.mxu0 0
        %1473 = vmatprep.mubr.bf16.mxu0 0
        %1474 = vmatmul.mubr.bf16.gmra.mrb[0].mxu0 %v1435
        %v1475 = vpop.f32.mrb[0].mxu0
        %v1476 = vadd.f32 0.0, %v1475
        %v1477 = vpop.f32.mrb[0].mxu0
        %v1478 = vpop.f32.mrb[0].mxu0
        %v1479 = vpop.f32.mrb[0].mxu0
        %1480 = vdwg.mxu0
        %1481 = vrot.lane.b32.xlu0 %v448, 64
        %v1482 = vpop.permute.xlu0 %1481
        %v1484 = vsel %vm473, %v1417, 0
        %v1487 = vsel %vm1437, %v1482, 0
        %1489 = vmatprep.subr.bf16.mxu0 0
        %1490 = vmatpush1.bf16.msra.mxu0 %v1487
        %1491 = vmatprep.subr.bf16.mxu0 0
        %1492 = vmatpush1.bf16.msra.mxu0 0
        %1493 = vmatprep.subr.bf16.mxu0 0
        %1494 = vmatpush1.bf16.msra.mxu0 0
        %1495 = vmatprep.subr.bf16.mxu0 0
        %1496 = vmatpush1.bf16.msra.mxu0 0
        %1497 = vmatprep.subr.bf16.mxu0 0
        %1498 = vmatpush1.bf16.msra.mxu0 0
        %1499 = vmatprep.subr.bf16.mxu0 0
        %1500 = vmatpush1.bf16.msra.mxu0 0
        %1501 = vmatprep.subr.bf16.mxu0 0
        %1502 = vmatpush1.bf16.msra.mxu0 0
        %1503 = vmatprep.subr.bf16.mxu0 0
        %1504 = vmatpush1.bf16.msra.mxu0 0
        %1505 = vmatprep.subr.bf16.mxu0 0
        %1506 = vmatpush1.bf16.msra.mxu0 0
        %1507 = vmatprep.subr.bf16.mxu0 0
        %1508 = vmatpush1.bf16.msra.mxu0 0
        %1509 = vmatprep.subr.bf16.mxu0 0
        %1510 = vmatpush1.bf16.msra.mxu0 0
        %1511 = vmatprep.subr.bf16.mxu0 0
        %1512 = vmatpush1.bf16.msra.mxu0 0
        %1513 = vmatprep.subr.bf16.mxu0 0
        %1514 = vmatpush1.bf16.msra.mxu0 0
        %1515 = vmatprep.subr.bf16.mxu0 0
        %1516 = vmatpush1.bf16.msra.mxu0 0
        %1517 = vmatprep.subr.bf16.mxu0 0
        %1518 = vmatpush1.bf16.msra.mxu0 0
        %1519 = vmatprep.subr.bf16.mxu0 0
        %1520 = vmatpush1.bf16.msra.mxu0 0
        %1521 = vmatprep.mubr.bf16.mxu0 0
        %1522 = vmatmul.mubr.bf16.gmra.mrb[0].mxu0 %v1484
        %v1523 = vpop.f32.mrb[0].mxu0
        %v1524 = vadd.f32 0.0, %v1523
        %v1525 = vpop.f32.mrb[0].mxu0
        %v1526 = vpop.f32.mrb[0].mxu0
        %v1527 = vpop.f32.mrb[0].mxu0
        %1528 = vdwg.mxu0
        %1529 = vrot.lane.b32.xlu0 %v456, 64
        %v1530 = vpop.permute.xlu0 %1529
        %v1532 = vsel %vm473, %v1418, 0
        %v1535 = vsel %vm1437, %v1530, 0
        %1537 = vmatprep.subr.bf16.mxu0 0
        %1538 = vmatpush1.bf16.msra.mxu0 %v1535
        %1539 = vmatprep.subr.bf16.mxu0 0
        %1540 = vmatpush1.bf16.msra.mxu0 0
        %1541 = vmatprep.subr.bf16.mxu0 0
        %1542 = vmatpush1.bf16.msra.mxu0 0
        %1543 = vmatprep.subr.bf16.mxu0 0
        %1544 = vmatpush1.bf16.msra.mxu0 0
        %1545 = vmatprep.subr.bf16.mxu0 0
        %1546 = vmatpush1.bf16.msra.mxu0 0
        %1547 = vmatprep.subr.bf16.mxu0 0
        %1548 = vmatpush1.bf16.msra.mxu0 0
        %1549 = vmatprep.subr.bf16.mxu0 0
        %1550 = vmatpush1.bf16.msra.mxu0 0
        %1551 = vmatprep.subr.bf16.mxu0 0
        %1552 = vmatpush1.bf16.msra.mxu0 0
        %1553 = vmatprep.subr.bf16.mxu0 0
        %1554 = vmatpush1.bf16.msra.mxu0 0
        %1555 = vmatprep.subr.bf16.mxu0 0
        %1556 = vmatpush1.bf16.msra.mxu0 0
        %1557 = vmatprep.subr.bf16.mxu0 0
        %1558 = vmatpush1.bf16.msra.mxu0 0
        %1559 = vmatprep.subr.bf16.mxu0 0
        %1560 = vmatpush1.bf16.msra.mxu0 0
        %1561 = vmatprep.subr.bf16.mxu0 0
        %1562 = vmatpush1.bf16.msra.mxu0 0
        %1563 = vmatprep.subr.bf16.mxu0 0
        %1564 = vmatpush1.bf16.msra.mxu0 0
        %1565 = vmatprep.subr.bf16.mxu0 0
        %1566 = vmatpush1.bf16.msra.mxu0 0
        %1567 = vmatprep.subr.bf16.mxu0 0
        %1568 = vmatpush1.bf16.msra.mxu0 0
        %1569 = vmatprep.mubr.bf16.mxu0 0
        %1570 = vmatmul.mubr.bf16.gmra.mrb[0].mxu0 %v1532
        %v1571 = vpop.f32.mrb[0].mxu0
        %v1572 = vadd.f32 0.0, %v1571
        %v1573 = vpop.f32.mrb[0].mxu0
        %v1574 = vpop.f32.mrb[0].mxu0
        %v1575 = vpop.f32.mrb[0].mxu0
        %1576 = vdwg.mxu0
        %1577 = vrot.lane.b32.xlu0 %v464, 64
        %v1578 = vpop.permute.xlu0 %1577
        %v1580 = vsel %vm473, %v1419, 0
        %v1583 = vsel %vm1437, %v1578, 0
        %1585 = vmatprep.subr.bf16.mxu0 0
        %1586 = vmatpush1.bf16.msra.mxu0 %v1583
        %1587 = vmatprep.subr.bf16.mxu0 0
        %1588 = vmatpush1.bf16.msra.mxu0 0
        %1589 = vmatprep.subr.bf16.mxu0 0
        %1590 = vmatpush1.bf16.msra.mxu0 0
        %1591 = vmatprep.subr.bf16.mxu0 0
        %1592 = vmatpush1.bf16.msra.mxu0 0
        %1593 = vmatprep.subr.bf16.mxu0 0
        %1594 = vmatpush1.bf16.msra.mxu0 0
        %1595 = vmatprep.subr.bf16.mxu0 0
        %1596 = vmatpush1.bf16.msra.mxu0 0
        %1597 = vmatprep.subr.bf16.mxu0 0
        %1598 = vmatpush1.bf16.msra.mxu0 0
        %1599 = vmatprep.subr.bf16.mxu0 0
        %1600 = vmatpush1.bf16.msra.mxu0 0
        %1601 = vmatprep.subr.bf16.mxu0 0
        %1602 = vmatpush1.bf16.msra.mxu0 0
        %1603 = vmatprep.subr.bf16.mxu0 0
        %1604 = vmatpush1.bf16.msra.mxu0 0
        %1605 = vmatprep.subr.bf16.mxu0 0
        %1606 = vmatpush1.bf16.msra.mxu0 0
        %1607 = vmatprep.subr.bf16.mxu0 0
        %1608 = vmatpush1.bf16.msra.mxu0 0
        %1609 = vmatprep.subr.bf16.mxu0 0
        %1610 = vmatpush1.bf16.msra.mxu0 0
        %1611 = vmatprep.subr.bf16.mxu0 0
        %1612 = vmatpush1.bf16.msra.mxu0 0
        %1613 = vmatprep.subr.bf16.mxu0 0
        %1614 = vmatpush1.bf16.msra.mxu0 0
        %1615 = vmatprep.subr.bf16.mxu0 0
        %1616 = vmatpush1.bf16.msra.mxu0 0
        %1617 = vmatprep.mubr.bf16.mxu0 0
        %1618 = vmatmul.mubr.bf16.gmra.mrb[0].mxu0 %v1580
        %v1619 = vpop.f32.mrb[0].mxu0
        %v1620 = vadd.f32 0.0, %v1619
        %v1621 = vpop.f32.mrb[0].mxu0
        %v1622 = vpop.f32.mrb[0].mxu0
        %v1623 = vpop.f32.mrb[0].mxu0
        %1624 = vdwg.mxu0
        %1625 = vrot.lane.b32.xlu0 %v440, 64
        %v1626 = vpop.permute.xlu0 %1625
        %v1628 = vsel %vm473, %v1420, 0
        %v1631 = vsel %vm1437, %v1626, 0
        %1633 = vmatprep.subr.bf16.mxu0 0
        %1634 = vmatpush1.bf16.msra.mxu0 %v1631
        %1635 = vmatprep.subr.bf16.mxu0 0
        %1636 = vmatpush1.bf16.msra.mxu0 0
        %1637 = vmatprep.subr.bf16.mxu0 0
        %1638 = vmatpush1.bf16.msra.mxu0 0
        %1639 = vmatprep.subr.bf16.mxu0 0
        %1640 = vmatpush1.bf16.msra.mxu0 0
        %1641 = vmatprep.subr.bf16.mxu0 0
        %1642 = vmatpush1.bf16.msra.mxu0 0
        %1643 = vmatprep.subr.bf16.mxu0 0
        %1644 = vmatpush1.bf16.msra.mxu0 0
        %1645 = vmatprep.subr.bf16.mxu0 0
        %1646 = vmatpush1.bf16.msra.mxu0 0
        %1647 = vmatprep.subr.bf16.mxu0 0
        %1648 = vmatpush1.bf16.msra.mxu0 0
        %1649 = vmatprep.subr.bf16.mxu0 0
        %1650 = vmatpush1.bf16.msra.mxu0 0
        %1651 = vmatprep.subr.bf16.mxu0 0
        %1652 = vmatpush1.bf16.msra.mxu0 0
        %1653 = vmatprep.subr.bf16.mxu0 0
        %1654 = vmatpush1.bf16.msra.mxu0 0
        %1655 = vmatprep.subr.bf16.mxu0 0
        %1656 = vmatpush1.bf16.msra.mxu0 0
        %1657 = vmatprep.subr.bf16.mxu0 0
        %1658 = vmatpush1.bf16.msra.mxu0 0
        %1659 = vmatprep.subr.bf16.mxu0 0
        %1660 = vmatpush1.bf16.msra.mxu0 0
        %1661 = vmatprep.subr.bf16.mxu0 0
        %1662 = vmatpush1.bf16.msra.mxu0 0
        %1663 = vmatprep.subr.bf16.mxu0 0
        %1664 = vmatpush1.bf16.msra.mxu0 0
        %1665 = vmatprep.mubr.bf16.mxu0 0
        %1666 = vmatmul.mubr.bf16.gmra.mrb[0].mxu0 %v1628
        %v1667 = vpop.f32.mrb[0].mxu0
        %v1668 = vadd.f32 0.0, %v1667
        %v1669 = vpop.f32.mrb[0].mxu0
        %v1670 = vpop.f32.mrb[0].mxu0
        %v1671 = vpop.f32.mrb[0].mxu0
        %1672 = vdwg.mxu0
        %1673 = vrot.lane.b32.xlu0 %v450, 64
        %v1674 = vpop.permute.xlu0 %1673
        %v1676 = vsel %vm473, %v1421, 0
        %v1679 = vsel %vm1437, %v1674, 0
        %1681 = vmatprep.subr.bf16.mxu0 0
        %1682 = vmatpush1.bf16.msra.mxu0 %v1679
        %1683 = vmatprep.subr.bf16.mxu0 0
        %1684 = vmatpush1.bf16.msra.mxu0 0
        %1685 = vmatprep.subr.bf16.mxu0 0
        %1686 = vmatpush1.bf16.msra.mxu0 0
        %1687 = vmatprep.subr.bf16.mxu0 0
        %1688 = vmatpush1.bf16.msra.mxu0 0
        %1689 = vmatprep.subr.bf16.mxu0 0
        %1690 = vmatpush1.bf16.msra.mxu0 0
        %1691 = vmatprep.subr.bf16.mxu0 0
        %1692 = vmatpush1.bf16.msra.mxu0 0
        %1693 = vmatprep.subr.bf16.mxu0 0
        %1694 = vmatpush1.bf16.msra.mxu0 0
        %1695 = vmatprep.subr.bf16.mxu0 0
        %1696 = vmatpush1.bf16.msra.mxu0 0
        %1697 = vmatprep.subr.bf16.mxu0 0
        %1698 = vmatpush1.bf16.msra.mxu0 0
        %1699 = vmatprep.subr.bf16.mxu0 0
        %1700 = vmatpush1.bf16.msra.mxu0 0
        %1701 = vmatprep.subr.bf16.mxu0 0
        %1702 = vmatpush1.bf16.msra.mxu0 0
        %1703 = vmatprep.subr.bf16.mxu0 0
        %1704 = vmatpush1.bf16.msra.mxu0 0
        %1705 = vmatprep.subr.bf16.mxu0 0
        %1706 = vmatpush1.bf16.msra.mxu0 0
        %1707 = vmatprep.subr.bf16.mxu0 0
        %1708 = vmatpush1.bf16.msra.mxu0 0
        %1709 = vmatprep.subr.bf16.mxu0 0
        %1710 = vmatpush1.bf16.msra.mxu0 0
        %1711 = vmatprep.subr.bf16.mxu0 0
        %1712 = vmatpush1.bf16.msra.mxu0 0
        %1713 = vmatprep.mubr.bf16.mxu0 0
        %1714 = vmatmul.mubr.bf16.gmra.mrb[0].mxu0 %v1676
        %v1715 = vpop.f32.mrb[0].mxu0
        %v1716 = vadd.f32 0.0, %v1715
        %v1717 = vpop.f32.mrb[0].mxu0
        %v1718 = vpop.f32.mrb[0].mxu0
        %v1719 = vpop.f32.mrb[0].mxu0
        %1720 = vdwg.mxu0
        %1721 = vrot.lane.b32.xlu0 %v458, 64
        %v1722 = vpop.permute.xlu0 %1721
        %v1724 = vsel %vm473, %v1422, 0
        %v1727 = vsel %vm1437, %v1722, 0
        %1729 = vmatprep.subr.bf16.mxu0 0
        %1730 = vmatpush1.bf16.msra.mxu0 %v1727
        %1731 = vmatprep.subr.bf16.mxu0 0
        %1732 = vmatpush1.bf16.msra.mxu0 0
        %1733 = vmatprep.subr.bf16.mxu0 0
        %1734 = vmatpush1.bf16.msra.mxu0 0
        %1735 = vmatprep.subr.bf16.mxu0 0
        %1736 = vmatpush1.bf16.msra.mxu0 0
        %1737 = vmatprep.subr.bf16.mxu0 0
        %1738 = vmatpush1.bf16.msra.mxu0 0
        %1739 = vmatprep.subr.bf16.mxu0 0
        %1740 = vmatpush1.bf16.msra.mxu0 0
        %1741 = vmatprep.subr.bf16.mxu0 0
        %1742 = vmatpush1.bf16.msra.mxu0 0
        %1743 = vmatprep.subr.bf16.mxu0 0
        %1744 = vmatpush1.bf16.msra.mxu0 0
        %1745 = vmatprep.subr.bf16.mxu0 0
        %1746 = vmatpush1.bf16.msra.mxu0 0
        %1747 = vmatprep.subr.bf16.mxu0 0
        %1748 = vmatpush1.bf16.msra.mxu0 0
        %1749 = vmatprep.subr.bf16.mxu0 0
        %1750 = vmatpush1.bf16.msra.mxu0 0
        %1751 = vmatprep.subr.bf16.mxu0 0
        %1752 = vmatpush1.bf16.msra.mxu0 0
        %1753 = vmatprep.subr.bf16.mxu0 0
        %1754 = vmatpush1.bf16.msra.mxu0 0
        %1755 = vmatprep.subr.bf16.mxu0 0
        %1756 = vmatpush1.bf16.msra.mxu0 0
        %1757 = vmatprep.subr.bf16.mxu0 0
        %1758 = vmatpush1.bf16.msra.mxu0 0
        %1759 = vmatprep.subr.bf16.mxu0 0
        %1760 = vmatpush1.bf16.msra.mxu0 0
        %1761 = vmatprep.mubr.bf16.mxu0 0
        %1762 = vmatmul.mubr.bf16.gmra.mrb[0].mxu0 %v1724
        %v1763 = vpop.f32.mrb[0].mxu0
        %v1764 = vadd.f32 0.0, %v1763
        %v1765 = vpop.f32.mrb[0].mxu0
        %v1766 = vpop.f32.mrb[0].mxu0
        %v1767 = vpop.f32.mrb[0].mxu0
        %1768 = vdwg.mxu0
        %1769 = vrot.lane.b32.xlu0 %v466, 64
        %v1770 = vpop.permute.xlu0 %1769
        %v1772 = vsel %vm473, %v1423, 0
        %v1775 = vsel %vm1437, %v1770, 0
        %1777 = vmatprep.subr.bf16.mxu0 0
        %1778 = vmatpush1.bf16.msra.mxu0 %v1775
        %1779 = vmatprep.subr.bf16.mxu0 0
        %1780 = vmatpush1.bf16.msra.mxu0 0
        %1781 = vmatprep.subr.bf16.mxu0 0
        %1782 = vmatpush1.bf16.msra.mxu0 0
        %1783 = vmatprep.subr.bf16.mxu0 0
        %1784 = vmatpush1.bf16.msra.mxu0 0
        %1785 = vmatprep.subr.bf16.mxu0 0
        %1786 = vmatpush1.bf16.msra.mxu0 0
        %1787 = vmatprep.subr.bf16.mxu0 0
        %1788 = vmatpush1.bf16.msra.mxu0 0
        %1789 = vmatprep.subr.bf16.mxu0 0
        %1790 = vmatpush1.bf16.msra.mxu0 0
        %1791 = vmatprep.subr.bf16.mxu0 0
        %1792 = vmatpush1.bf16.msra.mxu0 0
        %1793 = vmatprep.subr.bf16.mxu0 0
        %1794 = vmatpush1.bf16.msra.mxu0 0
        %1795 = vmatprep.subr.bf16.mxu0 0
        %1796 = vmatpush1.bf16.msra.mxu0 0
        %1797 = vmatprep.subr.bf16.mxu0 0
        %1798 = vmatpush1.bf16.msra.mxu0 0
        %1799 = vmatprep.subr.bf16.mxu0 0
        %1800 = vmatpush1.bf16.msra.mxu0 0
        %1801 = vmatprep.subr.bf16.mxu0 0
        %1802 = vmatpush1.bf16.msra.mxu0 0
        %1803 = vmatprep.subr.bf16.mxu0 0
        %1804 = vmatpush1.bf16.msra.mxu0 0
        %1805 = vmatprep.subr.bf16.mxu0 0
        %1806 = vmatpush1.bf16.msra.mxu0 0
        %1807 = vmatprep.subr.bf16.mxu0 0
        %1808 = vmatpush1.bf16.msra.mxu0 0
        %1809 = vmatprep.mubr.bf16.mxu0 0
        %1810 = vmatmul.mubr.bf16.gmra.mrb[0].mxu0 %v1772
        %v1811 = vpop.f32.mrb[0].mxu0
        %v1812 = vadd.f32 0.0, %v1811
        %v1813 = vpop.f32.mrb[0].mxu0
        %v1814 = vpop.f32.mrb[0].mxu0
        %v1815 = vpop.f32.mrb[0].mxu0
        %1816 = vdwg.mxu0
        %1817 = vrot.lane.b32.xlu0 %v441, 64
        %v1818 = vpop.permute.xlu0 %1817
        %v1820 = vsel %vm473, %v1424, 0
        %v1823 = vsel %vm1437, %v1818, 0
        %1825 = vmatprep.subr.bf16.mxu0 0
        %1826 = vmatpush1.bf16.msra.mxu0 %v1823
        %1827 = vmatprep.subr.bf16.mxu0 0
        %1828 = vmatpush1.bf16.msra.mxu0 0
        %1829 = vmatprep.subr.bf16.mxu0 0
        %1830 = vmatpush1.bf16.msra.mxu0 0
        %1831 = vmatprep.subr.bf16.mxu0 0
        %1832 = vmatpush1.bf16.msra.mxu0 0
        %1833 = vmatprep.subr.bf16.mxu0 0
        %1834 = vmatpush1.bf16.msra.mxu0 0
        %1835 = vmatprep.subr.bf16.mxu0 0
        %1836 = vmatpush1.bf16.msra.mxu0 0
        %1837 = vmatprep.subr.bf16.mxu0 0
        %1838 = vmatpush1.bf16.msra.mxu0 0
        %1839 = vmatprep.subr.bf16.mxu0 0
        %1840 = vmatpush1.bf16.msra.mxu0 0
        %1841 = vmatprep.subr.bf16.mxu0 0
        %1842 = vmatpush1.bf16.msra.mxu0 0
        %1843 = vmatprep.subr.bf16.mxu0 0
        %1844 = vmatpush1.bf16.msra.mxu0 0
        %1845 = vmatprep.subr.bf16.mxu0 0
        %1846 = vmatpush1.bf16.msra.mxu0 0
        %1847 = vmatprep.subr.bf16.mxu0 0
        %1848 = vmatpush1.bf16.msra.mxu0 0
        %1849 = vmatprep.subr.bf16.mxu0 0
        %1850 = vmatpush1.bf16.msra.mxu0 0
        %1851 = vmatprep.subr.bf16.mxu0 0
        %1852 = vmatpush1.bf16.msra.mxu0 0
        %1853 = vmatprep.subr.bf16.mxu0 0
        %1854 = vmatpush1.bf16.msra.mxu0 0
        %1855 = vmatprep.subr.bf16.mxu0 0
        %1856 = vmatpush1.bf16.msra.mxu0 0
        %1857 = vmatprep.mubr.bf16.mxu0 0
        %1858 = vmatmul.mubr.bf16.gmra.mrb[0].mxu0 %v1820
        %v1859 = vpop.f32.mrb[0].mxu0
        %v1860 = vadd.f32 0.0, %v1859
        %v1861 = vpop.f32.mrb[0].mxu0
        %v1862 = vpop.f32.mrb[0].mxu0
        %v1863 = vpop.f32.mrb[0].mxu0
        %1864 = vdwg.mxu0
        %1865 = vrot.lane.b32.xlu0 %v452, 64
        %v1866 = vpop.permute.xlu0 %1865
        %v1868 = vsel %vm473, %v1425, 0
        %v1871 = vsel %vm1437, %v1866, 0
        %1873 = vmatprep.subr.bf16.mxu0 0
        %1874 = vmatpush1.bf16.msra.mxu0 %v1871
        %1875 = vmatprep.subr.bf16.mxu0 0
        %1876 = vmatpush1.bf16.msra.mxu0 0
        %1877 = vmatprep.subr.bf16.mxu0 0
        %1878 = vmatpush1.bf16.msra.mxu0 0
        %1879 = vmatprep.subr.bf16.mxu0 0
        %1880 = vmatpush1.bf16.msra.mxu0 0
        %1881 = vmatprep.subr.bf16.mxu0 0
        %1882 = vmatpush1.bf16.msra.mxu0 0
        %1883 = vmatprep.subr.bf16.mxu0 0
        %1884 = vmatpush1.bf16.msra.mxu0 0
        %1885 = vmatprep.subr.bf16.mxu0 0
        %1886 = vmatpush1.bf16.msra.mxu0 0
        %1887 = vmatprep.subr.bf16.mxu0 0
        %1888 = vmatpush1.bf16.msra.mxu0 0
        %1889 = vmatprep.subr.bf16.mxu0 0
        %1890 = vmatpush1.bf16.msra.mxu0 0
        %1891 = vmatprep.subr.bf16.mxu0 0
        %1892 = vmatpush1.bf16.msra.mxu0 0
        %1893 = vmatprep.subr.bf16.mxu0 0
        %1894 = vmatpush1.bf16.msra.mxu0 0
        %1895 = vmatprep.subr.bf16.mxu0 0
        %1896 = vmatpush1.bf16.msra.mxu0 0
        %1897 = vmatprep.subr.bf16.mxu0 0
        %1898 = vmatpush1.bf16.msra.mxu0 0
        %1899 = vmatprep.subr.bf16.mxu0 0
        %1900 = vmatpush1.bf16.msra.mxu0 0
        %1901 = vmatprep.subr.bf16.mxu0 0
        %1902 = vmatpush1.bf16.msra.mxu0 0
        %1903 = vmatprep.subr.bf16.mxu0 0
        %1904 = vmatpush1.bf16.msra.mxu0 0
        %1905 = vmatprep.mubr.bf16.mxu0 0
        %1906 = vmatmul.mubr.bf16.gmra.mrb[0].mxu0 %v1868
        %v1907 = vpop.f32.mrb[0].mxu0
        %v1908 = vadd.f32 0.0, %v1907
        %v1909 = vpop.f32.mrb[0].mxu0
        %v1910 = vpop.f32.mrb[0].mxu0
        %v1911 = vpop.f32.mrb[0].mxu0
        %1912 = vdwg.mxu0
        %1913 = vrot.lane.b32.xlu0 %v460, 64
        %v1914 = vpop.permute.xlu0 %1913
        %v1916 = vsel %vm473, %v1426, 0
        %v1919 = vsel %vm1437, %v1914, 0
        %1921 = vmatprep.subr.bf16.mxu0 0
        %1922 = vmatpush1.bf16.msra.mxu0 %v1919
        %1923 = vmatprep.subr.bf16.mxu0 0
        %1924 = vmatpush1.bf16.msra.mxu0 0
        %1925 = vmatprep.subr.bf16.mxu0 0
        %1926 = vmatpush1.bf16.msra.mxu0 0
        %1927 = vmatprep.subr.bf16.mxu0 0
        %1928 = vmatpush1.bf16.msra.mxu0 0
        %1929 = vmatprep.subr.bf16.mxu0 0
        %1930 = vmatpush1.bf16.msra.mxu0 0
        %1931 = vmatprep.subr.bf16.mxu0 0
        %1932 = vmatpush1.bf16.msra.mxu0 0
        %1933 = vmatprep.subr.bf16.mxu0 0
        %1934 = vmatpush1.bf16.msra.mxu0 0
        %1935 = vmatprep.subr.bf16.mxu0 0
        %1936 = vmatpush1.bf16.msra.mxu0 0
        %1937 = vmatprep.subr.bf16.mxu0 0
        %1938 = vmatpush1.bf16.msra.mxu0 0
        %1939 = vmatprep.subr.bf16.mxu0 0
        %1940 = vmatpush1.bf16.msra.mxu0 0
        %1941 = vmatprep.subr.bf16.mxu0 0
        %1942 = vmatpush1.bf16.msra.mxu0 0
        %1943 = vmatprep.subr.bf16.mxu0 0
        %1944 = vmatpush1.bf16.msra.mxu0 0
        %1945 = vmatprep.subr.bf16.mxu0 0
        %1946 = vmatpush1.bf16.msra.mxu0 0
        %1947 = vmatprep.subr.bf16.mxu0 0
        %1948 = vmatpush1.bf16.msra.mxu0 0
        %1949 = vmatprep.subr.bf16.mxu0 0
        %1950 = vmatpush1.bf16.msra.mxu0 0
        %1951 = vmatprep.subr.bf16.mxu0 0
        %1952 = vmatpush1.bf16.msra.mxu0 0
        %1953 = vmatprep.mubr.bf16.mxu0 0
        %1954 = vmatmul.mubr.bf16.gmra.mrb[0].mxu0 %v1916
        %v1955 = vpop.f32.mrb[0].mxu0
        %v1956 = vadd.f32 0.0, %v1955
        %v1957 = vpop.f32.mrb[0].mxu0
        %v1958 = vpop.f32.mrb[0].mxu0
        %v1959 = vpop.f32.mrb[0].mxu0
        %1960 = vdwg.mxu0
        %1961 = vrot.lane.b32.xlu0 %v468, 64
        %v1962 = vpop.permute.xlu0 %1961
        %v1964 = vsel %vm473, %v1427, 0
        %v1967 = vsel %vm1437, %v1962, 0
        %1969 = vmatprep.subr.bf16.mxu0 0
        %1970 = vmatpush1.bf16.msra.mxu0 %v1967
        %1971 = vmatprep.subr.bf16.mxu0 0
        %1972 = vmatpush1.bf16.msra.mxu0 0
        %1973 = vmatprep.subr.bf16.mxu0 0
        %1974 = vmatpush1.bf16.msra.mxu0 0
        %1975 = vmatprep.subr.bf16.mxu0 0
        %1976 = vmatpush1.bf16.msra.mxu0 0
        %1977 = vmatprep.subr.bf16.mxu0 0
        %1978 = vmatpush1.bf16.msra.mxu0 0
        %1979 = vmatprep.subr.bf16.mxu0 0
        %1980 = vmatpush1.bf16.msra.mxu0 0
        %1981 = vmatprep.subr.bf16.mxu0 0
        %1982 = vmatpush1.bf16.msra.mxu0 0
        %1983 = vmatprep.subr.bf16.mxu0 0
        %1984 = vmatpush1.bf16.msra.mxu0 0
        %1985 = vmatprep.subr.bf16.mxu0 0
        %1986 = vmatpush1.bf16.msra.mxu0 0
        %1987 = vmatprep.subr.bf16.mxu0 0
        %1988 = vmatpush1.bf16.msra.mxu0 0
        %1989 = vmatprep.subr.bf16.mxu0 0
        %1990 = vmatpush1.bf16.msra.mxu0 0
        %1991 = vmatprep.subr.bf16.mxu0 0
        %1992 = vmatpush1.bf16.msra.mxu0 0
        %1993 = vmatprep.subr.bf16.mxu0 0
        %1994 = vmatpush1.bf16.msra.mxu0 0
        %1995 = vmatprep.subr.bf16.mxu0 0
        %1996 = vmatpush1.bf16.msra.mxu0 0
        %1997 = vmatprep.subr.bf16.mxu0 0
        %1998 = vmatpush1.bf16.msra.mxu0 0
        %1999 = vmatprep.subr.bf16.mxu0 0
        %2000 = vmatpush1.bf16.msra.mxu0 0
        %2001 = vmatprep.mubr.bf16.mxu0 0
        %2002 = vmatmul.mubr.bf16.gmra.mrb[0].mxu0 %v1964
        %v2003 = vpop.f32.mrb[0].mxu0
        %v2004 = vadd.f32 0.0, %v2003
        %v2005 = vpop.f32.mrb[0].mxu0
        %v2006 = vpop.f32.mrb[0].mxu0
        %v2007 = vpop.f32.mrb[0].mxu0
        %2008 = vdwg.mxu0
        %2009 = vrot.lane.b32.xlu0 %v442, 64
        %v2010 = vpop.permute.xlu0 %2009
        %v2012 = vsel %vm473, %v1428, 0
        %v2015 = vsel %vm1437, %v2010, 0
        %2017 = vmatprep.subr.bf16.mxu0 0
        %2018 = vmatpush1.bf16.msra.mxu0 %v2015
        %2019 = vmatprep.subr.bf16.mxu0 0
        %2020 = vmatpush1.bf16.msra.mxu0 0
        %2021 = vmatprep.subr.bf16.mxu0 0
        %2022 = vmatpush1.bf16.msra.mxu0 0
        %2023 = vmatprep.subr.bf16.mxu0 0
        %2024 = vmatpush1.bf16.msra.mxu0 0
        %2025 = vmatprep.subr.bf16.mxu0 0
        %2026 = vmatpush1.bf16.msra.mxu0 0
        %2027 = vmatprep.subr.bf16.mxu0 0
        %2028 = vmatpush1.bf16.msra.mxu0 0
        %2029 = vmatprep.subr.bf16.mxu0 0
        %2030 = vmatpush1.bf16.msra.mxu0 0
        %2031 = vmatprep.subr.bf16.mxu0 0
        %2032 = vmatpush1.bf16.msra.mxu0 0
        %2033 = vmatprep.subr.bf16.mxu0 0
        %2034 = vmatpush1.bf16.msra.mxu0 0
        %2035 = vmatprep.subr.bf16.mxu0 0
        %2036 = vmatpush1.bf16.msra.mxu0 0
        %2037 = vmatprep.subr.bf16.mxu0 0
        %2038 = vmatpush1.bf16.msra.mxu0 0
        %2039 = vmatprep.subr.bf16.mxu0 0
        %2040 = vmatpush1.bf16.msra.mxu0 0
        %2041 = vmatprep.subr.bf16.mxu0 0
        %2042 = vmatpush1.bf16.msra.mxu0 0
        %2043 = vmatprep.subr.bf16.mxu0 0
        %2044 = vmatpush1.bf16.msra.mxu0 0
        %2045 = vmatprep.subr.bf16.mxu0 0
        %2046 = vmatpush1.bf16.msra.mxu0 0
        %2047 = vmatprep.subr.bf16.mxu0 0
        %2048 = vmatpush1.bf16.msra.mxu0 0
        %2049 = vmatprep.mubr.bf16.mxu0 0
        %2050 = vmatmul.mubr.bf16.gmra.mrb[0].mxu0 %v2012
        %v2051 = vpop.f32.mrb[0].mxu0
        %v2052 = vadd.f32 0.0, %v2051
        %v2053 = vpop.f32.mrb[0].mxu0
        %v2054 = vpop.f32.mrb[0].mxu0
        %v2055 = vpop.f32.mrb[0].mxu0
        %2056 = vdwg.mxu0
        %2057 = vrot.lane.b32.xlu0 %v454, 64
        %v2058 = vpop.permute.xlu0 %2057
        %v2060 = vsel %vm473, %v1429, 0
        %v2063 = vsel %vm1437, %v2058, 0
        %2065 = vmatprep.subr.bf16.mxu0 0
        %2066 = vmatpush1.bf16.msra.mxu0 %v2063
        %2067 = vmatprep.subr.bf16.mxu0 0
        %2068 = vmatpush1.bf16.msra.mxu0 0
        %2069 = vmatprep.subr.bf16.mxu0 0
        %2070 = vmatpush1.bf16.msra.mxu0 0
        %2071 = vmatprep.subr.bf16.mxu0 0
        %2072 = vmatpush1.bf16.msra.mxu0 0
        %2073 = vmatprep.subr.bf16.mxu0 0
        %2074 = vmatpush1.bf16.msra.mxu0 0
        %2075 = vmatprep.subr.bf16.mxu0 0
        %2076 = vmatpush1.bf16.msra.mxu0 0
        %2077 = vmatprep.subr.bf16.mxu0 0
        %2078 = vmatpush1.bf16.msra.mxu0 0
        %2079 = vmatprep.subr.bf16.mxu0 0
        %2080 = vmatpush1.bf16.msra.mxu0 0
        %2081 = vmatprep.subr.bf16.mxu0 0
        %2082 = vmatpush1.bf16.msra.mxu0 0
        %2083 = vmatprep.subr.bf16.mxu0 0
        %2084 = vmatpush1.bf16.msra.mxu0 0
        %2085 = vmatprep.subr.bf16.mxu0 0
        %2086 = vmatpush1.bf16.msra.mxu0 0
        %2087 = vmatprep.subr.bf16.mxu0 0
        %2088 = vmatpush1.bf16.msra.mxu0 0
        %2089 = vmatprep.subr.bf16.mxu0 0
        %2090 = vmatpush1.bf16.msra.mxu0 0
        %2091 = vmatprep.subr.bf16.mxu0 0
        %2092 = vmatpush1.bf16.msra.mxu0 0
        %2093 = vmatprep.subr.bf16.mxu0 0
        %2094 = vmatpush1.bf16.msra.mxu0 0
        %2095 = vmatprep.subr.bf16.mxu0 0
        %2096 = vmatpush1.bf16.msra.mxu0 0
        %2097 = vmatprep.mubr.bf16.mxu0 0
        %2098 = vmatmul.mubr.bf16.gmra.mrb[0].mxu0 %v2060
        %v2099 = vpop.f32.mrb[0].mxu0
        %v2100 = vadd.f32 0.0, %v2099
        %v2101 = vpop.f32.mrb[0].mxu0
        %v2102 = vpop.f32.mrb[0].mxu0
        %v2103 = vpop.f32.mrb[0].mxu0
        %2104 = vdwg.mxu0
        %2105 = vrot.lane.b32.xlu0 %v462, 64
        %v2106 = vpop.permute.xlu0 %2105
        %v2108 = vsel %vm473, %v1430, 0
        %v2111 = vsel %vm1437, %v2106, 0
        %2113 = vmatprep.subr.bf16.mxu0 0
        %2114 = vmatpush1.bf16.msra.mxu0 %v2111
        %2115 = vmatprep.subr.bf16.mxu0 0
        %2116 = vmatpush1.bf16.msra.mxu0 0
        %2117 = vmatprep.subr.bf16.mxu0 0
        %2118 = vmatpush1.bf16.msra.mxu0 0
        %2119 = vmatprep.subr.bf16.mxu0 0
        %2120 = vmatpush1.bf16.msra.mxu0 0
        %2121 = vmatprep.subr.bf16.mxu0 0
        %2122 = vmatpush1.bf16.msra.mxu0 0
        %2123 = vmatprep.subr.bf16.mxu0 0
        %2124 = vmatpush1.bf16.msra.mxu0 0
        %2125 = vmatprep.subr.bf16.mxu0 0
        %2126 = vmatpush1.bf16.msra.mxu0 0
        %2127 = vmatprep.subr.bf16.mxu0 0
        %2128 = vmatpush1.bf16.msra.mxu0 0
        %2129 = vmatprep.subr.bf16.mxu0 0
        %2130 = vmatpush1.bf16.msra.mxu0 0
        %2131 = vmatprep.subr.bf16.mxu0 0
        %2132 = vmatpush1.bf16.msra.mxu0 0
        %2133 = vmatprep.subr.bf16.mxu0 0
        %2134 = vmatpush1.bf16.msra.mxu0 0
        %2135 = vmatprep.subr.bf16.mxu0 0
        %2136 = vmatpush1.bf16.msra.mxu0 0
        %2137 = vmatprep.subr.bf16.mxu0 0
        %2138 = vmatpush1.bf16.msra.mxu0 0
        %2139 = vmatprep.subr.bf16.mxu0 0
        %2140 = vmatpush1.bf16.msra.mxu0 0
        %2141 = vmatprep.subr.bf16.mxu0 0
        %2142 = vmatpush1.bf16.msra.mxu0 0
        %2143 = vmatprep.subr.bf16.mxu0 0
        %2144 = vmatpush1.bf16.msra.mxu0 0
        %2145 = vmatprep.mubr.bf16.mxu0 0
        %2146 = vmatmul.mubr.bf16.gmra.mrb[0].mxu0 %v2108
        %v2147 = vpop.f32.mrb[0].mxu0
        %v2148 = vadd.f32 0.0, %v2147
        %v2149 = vpop.f32.mrb[0].mxu0
        %v2150 = vpop.f32.mrb[0].mxu0
        %v2151 = vpop.f32.mrb[0].mxu0
        %2152 = vdwg.mxu0
        %2153 = vrot.lane.b32.xlu0 %v470, 64
        %v2154 = vpop.permute.xlu0 %2153
        %v2156 = vsel %vm473, %v1431, 0
        %v2159 = vsel %vm1437, %v2154, 0
        %2161 = vmatprep.subr.bf16.mxu0 0
        %2162 = vmatpush1.bf16.msra.mxu0 %v2159
        %2163 = vmatprep.subr.bf16.mxu0 0
        %2164 = vmatpush1.bf16.msra.mxu0 0
        %2165 = vmatprep.subr.bf16.mxu0 0
        %2166 = vmatpush1.bf16.msra.mxu0 0
        %2167 = vmatprep.subr.bf16.mxu0 0
        %2168 = vmatpush1.bf16.msra.mxu0 0
        %2169 = vmatprep.subr.bf16.mxu0 0
        %2170 = vmatpush1.bf16.msra.mxu0 0
        %2171 = vmatprep.subr.bf16.mxu0 0
        %2172 = vmatpush1.bf16.msra.mxu0 0
        %2173 = vmatprep.subr.bf16.mxu0 0
        %2174 = vmatpush1.bf16.msra.mxu0 0
        %2175 = vmatprep.subr.bf16.mxu0 0
        %2176 = vmatpush1.bf16.msra.mxu0 0
        %2177 = vmatprep.subr.bf16.mxu0 0
        %2178 = vmatpush1.bf16.msra.mxu0 0
        %2179 = vmatprep.subr.bf16.mxu0 0
        %2180 = vmatpush1.bf16.msra.mxu0 0
        %2181 = vmatprep.subr.bf16.mxu0 0
        %2182 = vmatpush1.bf16.msra.mxu0 0
        %2183 = vmatprep.subr.bf16.mxu0 0
        %2184 = vmatpush1.bf16.msra.mxu0 0
        %2185 = vmatprep.subr.bf16.mxu0 0
        %2186 = vmatpush1.bf16.msra.mxu0 0
        %2187 = vmatprep.subr.bf16.mxu0 0
        %2188 = vmatpush1.bf16.msra.mxu0 0
        %2189 = vmatprep.subr.bf16.mxu0 0
        %2190 = vmatpush1.bf16.msra.mxu0 0
        %2191 = vmatprep.subr.bf16.mxu0 0
        %2192 = vmatpush1.bf16.msra.mxu0 0
        %2193 = vmatprep.mubr.bf16.mxu0 0
        %2194 = vmatmul.mubr.bf16.gmra.mrb[0].mxu0 %v2156
        %v2195 = vpop.f32.mrb[0].mxu0
        %v2196 = vadd.f32 0.0, %v2195
        %v2197 = vpop.f32.mrb[0].mxu0
        %v2198 = vpop.f32.mrb[0].mxu0
        %v2199 = vpop.f32.mrb[0].mxu0
        %2200 = vdwg.mxu0
        %2205 = vrot.lane.b32.xlu0 %v1524, 8
        %v2206 = vpop.permute.xlu0 %2205
        %2207 = vrot.lane.b32.xlu0 %v1716, 8
        %v2208 = vpop.permute.xlu0 %2207
        %2209 = vrot.lane.b32.xlu0 %v1908, 8
        %v2210 = vpop.permute.xlu0 %2209
        %2211 = vrot.lane.b32.xlu0 %v2100, 8
        %v2212 = vpop.permute.xlu0 %2211
        %2221 = vrot.lane.b32.xlu0 %v1572, 16
        %v2222 = vpop.permute.xlu0 %2221
        %2223 = vrot.lane.b32.xlu0 %v1764, 16
        %v2224 = vpop.permute.xlu0 %2223
        %2225 = vrot.lane.b32.xlu0 %v1956, 16
        %v2226 = vpop.permute.xlu0 %2225
        %2227 = vrot.lane.b32.xlu0 %v2148, 16
        %v2228 = vpop.permute.xlu0 %2227
        %2237 = vrot.lane.b32.xlu0 %v1620, 24
        %v2238 = vpop.permute.xlu0 %2237
        %2239 = vrot.lane.b32.xlu0 %v1812, 24
        %v2240 = vpop.permute.xlu0 %2239
        %2241 = vrot.lane.b32.xlu0 %v2004, 24
        %v2242 = vpop.permute.xlu0 %2241
        %2243 = vrot.lane.b32.xlu0 %v2196, 24
        %v2244 = vpop.permute.xlu0 %2243
        %v2249 = vsel %vm473, %v1476, %v2206
        %v2250 = vsel %vm473, %v1668, %v2208
        %v2251 = vsel %vm473, %v1860, %v2210
        %v2252 = vsel %vm473, %v2052, %v2212
        %vm2253 = vcmask 130048
        %v2254 = vsel %vm2253, %v2249, %v2222
        %v2255 = vsel %vm2253, %v2250, %v2224
        %v2256 = vsel %vm2253, %v2251, %v2226
        %v2257 = vsel %vm2253, %v2252, %v2228
        %vm2258 = vcmask 195584
        %v2259 = vsel %vm2258, %v2254, %v2238
        %v2260 = vsel %vm2258, %v2255, %v2240
        %v2261 = vsel %vm2258, %v2256, %v2242
        %v2262 = vsel %vm2258, %v2257, %v2244
        %v2263 = vpack.c.bf16 %v2260, %v2259
        %v2264 = vpack.c.bf16 %v2262, %v2261
        %v2266 = vlaneseq
        %v2267 = vshrl.u32 %v2266, 7
        %v2268 = vsub.s32 0, %v2267
        %v2269 = vrot.slane %v438, %v2268
        %v2275 = vunpack.c.l.b16 %v434
        %v2276 = vunpack.c.l.b16 %v435
        %v2277 = vunpack.c.l.b16 %v436
        %v2278 = vunpack.c.l.b16 %v437
        %v2279 = vpack.c.b16 %v2276, %v2275
        %v2280 = vpack.c.b16 %v2278, %v2277
        %v2284 = vsel %vm378, %v2263, 0
        %v2287 = vsel %vm378, %v2264, 0
        %2289 = vmatprep.subr.bf16.mxu0 0
        %2290 = vmatpush1.bf16.msra.mxu0 %v2279
        %2291 = vmatprep.subr.bf16.mxu0 0
        %2292 = vmatpush1.bf16.msra.mxu0 %v2280
        %2293 = vmatprep.subr.bf16.mxu0 0
        %2294 = vmatpush1.bf16.msra.mxu0 0
        %2295 = vmatprep.subr.bf16.mxu0 0
        %2296 = vmatpush1.bf16.msra.mxu0 0
        %2297 = vmatprep.subr.bf16.mxu0 0
        %2298 = vmatpush1.bf16.msra.mxu0 0
        %2299 = vmatprep.subr.bf16.mxu0 0
        %2300 = vmatpush1.bf16.msra.mxu0 0
        %2301 = vmatprep.subr.bf16.mxu0 0
        %2302 = vmatpush1.bf16.msra.mxu0 0
        %2303 = vmatprep.subr.bf16.mxu0 0
        %2304 = vmatpush1.bf16.msra.mxu0 0
        %2305 = vmatprep.subr.bf16.mxu0 0
        %2306 = vmatpush1.bf16.msra.mxu0 0
        %2307 = vmatprep.subr.bf16.mxu0 0
        %2308 = vmatpush1.bf16.msra.mxu0 0
        %2309 = vmatprep.subr.bf16.mxu0 0
        %2310 = vmatpush1.bf16.msra.mxu0 0
        %2311 = vmatprep.subr.bf16.mxu0 0
        %2312 = vmatpush1.bf16.msra.mxu0 0
        %2313 = vmatprep.subr.bf16.mxu0 0
        %2314 = vmatpush1.bf16.msra.mxu0 0
        %2315 = vmatprep.subr.bf16.mxu0 0
        %2316 = vmatpush1.bf16.msra.mxu0 0
        %2317 = vmatprep.subr.bf16.mxu0 0
        %2318 = vmatpush1.bf16.msra.mxu0 0
        %2319 = vmatprep.subr.bf16.mxu0 0
        %2320 = vmatpush1.bf16.msra.mxu0 0
        %2321 = vmatprep.mubr.bf16.mxu0 0
        %2322 = vmatmul.mubr.bf16.gmra.mrb[0].mxu0 %v2284
        %v2323 = vpop.f32.mrb[0].mxu0
        %v2324 = vadd.f32 %v2269, %v2323
        %v2325 = vpop.f32.mrb[0].mxu0
        %v2326 = vpop.f32.mrb[0].mxu0
        %v2327 = vadd.f32 %v2269, %v2326
        %v2328 = vpop.f32.mrb[0].mxu0
        %2329 = vmatprep.mubr.bf16.mxu0 0
        %2330 = vmatmul.mubr.bf16.gmra.mrb[0].mxu0 %v2287
        %v2331 = vpop.f32.mrb[0].mxu0
        %v2332 = vadd.f32 %v2269, %v2331
        %v2333 = vpop.f32.mrb[0].mxu0
        %v2334 = vpop.f32.mrb[0].mxu0
        %v2335 = vadd.f32 %v2269, %v2334
        %v2336 = vpop.f32.mrb[0].mxu0
        %2337 = vdwg.mxu0
        %2338 = vst.msk [vmem:[%s329] sm:$0xff] %vm378, %v2324
        %2339 = vst.msk [vmem:[%s329 + $0x8] sm:$0xff] %vm378, %v2327
        %2340 = vst.msk [vmem:[%s329 + $0x10] sm:$0xff] %vm378, %v2332
        %2341 = vst.msk [vmem:[%s329 + $0x18] sm:$0xff] %vm378, %v2335
        %2342 = vst.msk [vmem:[%s336] sm:$0xff] %vm473, %v515
        %2343 = vst.msk [vmem:[%s336 + $0x8] sm:$0xff] %vm473, %v563
        %2344 = vst.msk [vmem:[%s336 + $0x10] sm:$0xff] %vm473, %v611
        %2345 = vst.msk [vmem:[%s336 + $0x18] sm:$0xff] %vm473, %v659
        %2346 = vst.msk [vmem:[%s336 + $0x20] sm:$0xff] %vm473, %v707
        %2347 = vst.msk [vmem:[%s336 + $0x28] sm:$0xff] %vm473, %v755
        %2348 = vst.msk [vmem:[%s336 + $0x30] sm:$0xff] %vm473, %v803
        %2349 = vst.msk [vmem:[%s336 + $0x38] sm:$0xff] %vm473, %v851
        %2350 = vst.msk [vmem:[%s336 + $0x40] sm:$0xff] %vm473, %v899
        %2351 = vst.msk [vmem:[%s336 + $0x48] sm:$0xff] %vm473, %v947
        %2352 = vst.msk [vmem:[%s336 + $0x50] sm:$0xff] %vm473, %v995
        %2353 = vst.msk [vmem:[%s336 + $0x58] sm:$0xff] %vm473, %v1043
        %2354 = vst.msk [vmem:[%s336 + $0x60] sm:$0xff] %vm473, %v1091
        %2355 = vst.msk [vmem:[%s336 + $0x68] sm:$0xff] %vm473, %v1139
        %2356 = vst.msk [vmem:[%s336 + $0x70] sm:$0xff] %vm473, %v1187
        %2357 = vst.msk [vmem:[%s336 + $0x78] sm:$0xff] %vm473, %v1235
        %2358 = vst.msk [vmem:[%s343] sm:$0xff] %vm473, %v1400
        %2359 = vst.msk [vmem:[%s343 + $0x8] sm:$0xff] %vm473, %v1401
        %2360 = vst.msk [vmem:[%s343 + $0x10] sm:$0xff] %vm473, %v1402
        %2361 = vst.msk [vmem:[%s343 + $0x18] sm:$0xff] %vm473, %v1403
        %2362 = vst.msk [vmem:[%s343 + $0x20] sm:$0xff] %vm473, %v1404
        %2363 = vst.msk [vmem:[%s343 + $0x28] sm:$0xff] %vm473, %v1405
        %2364 = vst.msk [vmem:[%s343 + $0x30] sm:$0xff] %vm473, %v1406
        %2365 = vst.msk [vmem:[%s343 + $0x38] sm:$0xff] %vm473, %v1407
        %2366 = vst.msk [vmem:[%s343 + $0x40] sm:$0xff] %vm473, %v1408
        %2367 = vst.msk [vmem:[%s343 + $0x48] sm:$0xff] %vm473, %v1409
        %2368 = vst.msk [vmem:[%s343 + $0x50] sm:$0xff] %vm473, %v1410
        %2369 = vst.msk [vmem:[%s343 + $0x58] sm:$0xff] %vm473, %v1411
        %2370 = vst.msk [vmem:[%s343 + $0x60] sm:$0xff] %vm473, %v1412
        %2371 = vst.msk [vmem:[%s343 + $0x68] sm:$0xff] %vm473, %v1413
        %2372 = vst.msk [vmem:[%s343 + $0x70] sm:$0xff] %vm473, %v1414
        %2373 = vst.msk [vmem:[%s343 + $0x78] sm:$0xff] %vm473, %v1415
        %s2374 = sand.u32 %s147, 1
        %s2375 = scalar_lea.sflag [#allocation4], %s2374
        %s2376 = sand.u32 %s147, 1
        %s2377 = smul.addr %s2376, 32
        %s2378 = scalar_lea.vmem [#allocation8], %s2377
        %s2379 = sand.u32 %s29, 1
        %s2380 = scalar_lea.sflag [#allocation10], %s2379
        %s2381 = sand.u32 %s173, 1
        %s2382 = smul.addr %s2381, 128
        %s2383 = scalar_lea.vmem [#allocation9], %s2382
        %s2384 = sand.u32 %s29, 1
        %s2385 = scalar_lea.sflag [#allocation10], %s2384
        %s2386 = sand.u32 %s199, 1
        %s2387 = smul.addr %s2386, 128
        %s2388 = scalar_lea.vmem [#allocation11], %s2387
        // Predicated region
        $region53: #{tpu_custom_call.1} parent=39 // pred_check
          %p2389 = pneg %p157
        $region54: #{tpu_custom_call.1} parent=39 // pred_check_branch
          %2391 = sbr.rel (%p2389) target = $region56
        $region55: #{tpu_custom_call.1} parent=39 // pred_region
          %s2392 = smul.u32 4, %s29
          %s2394 = ssub.s32 512, 512
          %2395 = vsyncadd %s2375, %s2394
          %s2396 = smul.addr %s2392, 128
          %s2397 = scalar_lea.hbm %s5, %s2396
          %s2398 = sshll.u32 %s2378, 4
          %s2399 = int_to_ptr.vmem [resolvable:$true] %s2398
          %2404 = dma.vmem_to_hbm [thread:$0]  %s2399, 512, %s2397, %s2375, 128, 128, 8
        $region56: #{tpu_custom_call.1} parent=39 // pred_fallthru
          _
        // Predicated region
        $region57: #{tpu_custom_call.1} parent=39 // pred_check
          %p2405 = pneg %p183
        $region58: #{tpu_custom_call.1} parent=39 // pred_check_branch
          %2407 = sbr.rel (%p2405) target = $region60
        $region59: #{tpu_custom_call.1} parent=39 // pred_region
          %s2408 = smul.u32 4, %s29
          %s2410 = ssub.s32 2048, 2048
          %2411 = vsyncadd %s2380, %s2410
          %s2412 = smul.addr %s2408, 4
          %s2413 = smul.addr %s2412, 128
          %s2414 = scalar_lea.hbm %s6, %s2413
          %s2415 = sshll.u32 %s2383, 4
          %s2416 = int_to_ptr.vmem [resolvable:$true] %s2415
          %2421 = dma.vmem_to_hbm [thread:$0]  %s2416, 2048, %s2414, %s2380, 128, 128, 8
        $region60: #{tpu_custom_call.1} parent=39 // pred_fallthru
          _
        // Predicated region
        $region61: #{tpu_custom_call.1} parent=39 // pred_check
          %p2422 = pneg %p209
        $region62: #{tpu_custom_call.1} parent=39 // pred_check_branch
          %2424 = sbr.rel (%p2422) target = $region64
        $region63: #{tpu_custom_call.1} parent=39 // pred_region
          %s2425 = smul.u32 4, %s29
          %s2427 = ssub.s32 2048, 2048
          %2428 = vsyncadd %s2385, %s2427
          %s2429 = smul.addr %s2425, 4
          %s2430 = smul.addr %s2429, 128
          %s2431 = scalar_lea.hbm %s7, %s2430
          %s2432 = sshll.u32 %s2388, 4
          %s2433 = int_to_ptr.vmem [resolvable:$true] %s2432
          %2438 = dma.vmem_to_hbm [thread:$0]  %s2433, 2048, %s2431, %s2385, 128, 128, 8
        $region64: #{tpu_custom_call.1} parent=39 // pred_fallthru
          _
      $region40: #{tpu_custom_call.1} parent=5 // pred_fallthru
        _
      %p2439 = scmp.le.s32.totalorder 2, %s24
      // Predicated region
      $region65: #{tpu_custom_call.1} parent=5 // pred_check
        %p2440 = pneg %p2439
      $region66: #{tpu_custom_call.1} parent=5 // pred_check_branch
        %2442 = sbr.rel (%p2440) target = $region68
      $region67: #{tpu_custom_call.1} parent=5 // pred_region
        %s2443 = ssub.s32 %s24, 2
        // Predicated region
        $region69: #{tpu_custom_call.1} parent=67 // pred_check
          %p2444 = pneg %p163
        $region70: #{tpu_custom_call.1} parent=67 // pred_check_branch
          %2446 = sbr.rel (%p2444) target = $region72
        $region71: #{tpu_custom_call.1} parent=67 // pred_region
          %s2447 = sand.u32 %s148, 1
          %s2448 = scalar_lea.sflag [#allocation4], %s2447
          %s2449 = sand.u32 %s148, 1
          %s2450 = smul.addr %s2449, 32
          %s2451 = scalar_lea.vmem [#allocation8], %s2450
          %2452 = dma.done %s2448, 512
        $region72: #{tpu_custom_call.1} parent=67 // pred_fallthru
          _
        // Predicated region
        $region73: #{tpu_custom_call.1} parent=67 // pred_check
          %p2453 = pneg %p189
        $region74: #{tpu_custom_call.1} parent=67 // pred_check_branch
          %2455 = sbr.rel (%p2453) target = $region76
        $region75: #{tpu_custom_call.1} parent=67 // pred_region
          %s2456 = sand.u32 %s30, 1
          %s2457 = scalar_lea.sflag [#allocation10], %s2456
          %s2458 = sand.u32 %s174, 1
          %s2459 = smul.addr %s2458, 128
          %s2460 = scalar_lea.vmem [#allocation9], %s2459
          %2461 = dma.done %s2457, 2048
        $region76: #{tpu_custom_call.1} parent=67 // pred_fallthru
          _
        // Predicated region
        $region77: #{tpu_custom_call.1} parent=67 // pred_check
          %p2462 = pneg %p215
        $region78: #{tpu_custom_call.1} parent=67 // pred_check_branch
          %2464 = sbr.rel (%p2462) target = $region80
        $region79: #{tpu_custom_call.1} parent=67 // pred_region
          %s2465 = sand.u32 %s30, 1
          %s2466 = scalar_lea.sflag [#allocation10], %s2465
          %s2467 = sand.u32 %s200, 1
          %s2468 = smul.addr %s2467, 128
          %s2469 = scalar_lea.vmem [#allocation11], %s2468
          %2470 = dma.done %s2466, 2048
        $region80: #{tpu_custom_call.1} parent=67 // pred_fallthru
          _
      $region68: #{tpu_custom_call.1} parent=5 // pred_fallthru
        _
    $region6: #{tpu_custom_call.1} parent=1 // loop_footer
      %s28 = sadd.s32 1, %s24
    $region7: #{tpu_custom_call.1} parent=1 // loop_footer_branch
      %23 = sbr.rel target = $region3
    $region8: #{tpu_custom_call.1} parent=1 // loop_exit
      _
    %2471 = vsyncpa [#allocation3], 1
    %s2472 = scalar_lea.sflag [#allocation3], 1
    %2473 = vsyncpa %s2472, 1
    %2474 = vsyncpa [#allocation6], 1
    %2475 = vsyncpa [#allocation4], 1
    %s2476 = scalar_lea.sflag [#allocation4], 1
    %2477 = vsyncpa %s2476, 1
    %2478 = vsyncpa [#allocation10], 1
    %s2479 = scalar_lea.sflag [#allocation10], 1
    %2480 = vsyncpa %s2479, 1

</llo_original>
